<compile_context>
chip_gen: v5e
topology: v5e:2x2
jax: 0.10.0
libtpu: 0.0.40
codegen_flags: <defaults>
</compile_context>

<pallas_src>
import numpy as np
import jax
import jax.numpy as jnp
from jax import lax
from jax.experimental import pallas as pl
from jax.experimental.pallas import tpu as pltpu


# ----------------------------------------------------------------------------
# Deterministic parameter init (same scheme as the PyTorch module)
# ----------------------------------------------------------------------------
def orthonormal_initializer(output_size, input_size):
    I = np.eye(output_size)
    lr = 0.1
    eps = 0.05 / (output_size + input_size)
    success = False
    tries = 0
    while not success and tries < 10:
        Q = np.random.randn(input_size, output_size) / np.sqrt(output_size)
        for _ in range(100):
            QTQmI = Q.T.dot(Q) - I
            loss = np.sum(QTQmI ** 2 / 2)
            Q2 = Q ** 2
            Q -= lr * Q.dot(QTQmI) / (
                np.abs(Q2 + Q2.sum(axis=0, keepdims=True)
                       + Q2.sum(axis=1, keepdims=True) - 1) + eps)
            if np.max(Q) > 1e6 or loss > 1e6 or (not np.isfinite(loss)):
                tries += 1
                lr /= 2
                break
        success = True
    if not success:
        Q = np.random.randn(input_size, output_size) / np.sqrt(output_size)
    return np.transpose(Q.astype(np.float32))


def build_params(input_size, hidden_size, num_layers, bidirectional, seed=0):
    np.random.seed(seed)
    num_dir = 2 if bidirectional else 1
    params = []
    for layer in range(num_layers):
        lin = input_size if layer == 0 else hidden_size * num_dir
        layer_p = []
        for _ in range(num_dir):
            W = orthonormal_initializer(hidden_size, hidden_size + lin)  # (H, H+lin)
            W_h, W_x = W[:, :hidden_size], W[:, hidden_size:]
            w_ih = np.concatenate([W_x] * 4, 0)          # (4H, lin)
            w_hh = np.concatenate([W_h] * 4, 0)          # (4H, H)
            b_ih = np.zeros((4 * hidden_size,), np.float32)
            b_hh = np.zeros((4 * hidden_size,), np.float32)
            layer_p.append((jnp.asarray(w_ih), jnp.asarray(w_hh),
                            jnp.asarray(b_ih), jnp.asarray(b_hh)))
        params.append(layer_p)
    return params


# ----------------------------------------------------------------------------
# Padding / weight-prep helpers (done once, outside the forward hot path)
# ----------------------------------------------------------------------------
def _round_up(x, m):
    return ((x + m - 1) // m) * m


def _pad_axis(x, axis, target):
    if x.shape[axis] == target:
        return x
    pads = [(0, 0)] * x.ndim
    pads[axis] = (0, target - x.shape[axis])
    return jnp.pad(x, pads)


def prepare_params(params, hidden_size):
    """Pre-transpose + gate-wise pad weights to the kernel's lane-aligned layout.

    Per layer returns a dict:
      w_in : list of projection weights, one per SOURCE stream feeding the layer
             - layer 0:        [ (Din, ND*4Hp) ]           (raw input features)
             - layer > 0:      [ (Hp, ND*4Hp) ] * ND_prev  (padded fwd / bwd hidden)
      bias : (1, ND*4Hp)   b_ih + b_hh, gate-wise padded, all directions concatenated
      whh  : list of ND recurrent weights, each (Hp, 4Hp), resident in the kernel
    """
    H = hidden_size
    Hp = _round_up(H, 128)
    ND = len(params[0])
    prepped = []
    for li, layer_p in enumerate(params):
        whh_list, wih_t_list, bias_list = [], [], []
        for (w_ih, w_hh, b_ih, b_hh) in layer_p:
            Din = w_ih.shape[1]
            w_ih4 = jnp.asarray(w_ih, jnp.float32).reshape(4, H, Din)
            w_ih4 = jnp.pad(w_ih4, ((0, 0), (0, Hp - H), (0, 0)))
            wih_t_list.append(jnp.transpose(w_ih4.reshape(4 * Hp, Din)))   # (Din, 4Hp)

            w_hh4 = jnp.asarray(w_hh, jnp.float32).reshape(4, H, H)
            w_hh4 = jnp.pad(w_hh4, ((0, 0), (0, Hp - H), (0, Hp - H)))
            whh_list.append(jnp.transpose(w_hh4.reshape(4 * Hp, Hp)))      # (Hp, 4Hp)

            b = (jnp.asarray(b_ih, jnp.float32)
                 + jnp.asarray(b_hh, jnp.float32)).reshape(4, H)
            bias_list.append(jnp.pad(b, ((0, 0), (0, Hp - H))).reshape(1, 4 * Hp))

        bias_cat = jnp.concatenate(bias_list, axis=1)                      # (1, ND*4Hp)
        if li == 0:
            w_in = [jnp.concatenate(wih_t_list, axis=1)]                   # (Din, ND*4Hp)
        else:
            # previous layer stays in padded per-direction layout: split the
            # input-feature axis per source direction and pad each to Hp.
            w_in = []
            for src in range(ND):
                parts = []
                for w_t in wih_t_list:                                     # (ND*H, 4Hp)
                    block = w_t[src * H:(src + 1) * H, :]                  # (H, 4Hp)
                    parts.append(jnp.pad(block, ((0, Hp - H), (0, 0))))
                w_in.append(jnp.concatenate(parts, axis=1))                # (Hp, ND*4Hp)
        prepped.append(dict(w_in=w_in, bias=bias_cat, whh=whh_list))
    return prepped


# ----------------------------------------------------------------------------
# VMEM sizing / chunk selection
# ----------------------------------------------------------------------------
def _vmem_capacity_bytes():
    try:
        return int(pltpu.get_tpu_info().vmem_capacity_bytes)
    except Exception:
        return 64 * 1024 * 1024     # conservative (v7x per-TC)


def _choose_time_chunk(T, target, Bp, Hp, nd):
    """Largest divisor of T that is <= target and whose double-buffered
    gx/out/mask chunk streams fit a fraction of this chip's VMEM."""
    budget = int(_vmem_capacity_bytes() * 0.5)

    def stream_bytes(tc):
        return nd * 2 * tc * Bp * (4 * Hp + Hp + 1) * 4

    best = 1
    for d in range(1, T + 1):
        if T % d == 0 and d <= target and stream_bytes(d) <= budget:
            best = d
    return best


def _vmem_limit(Tc, Bp, Hp, nd):
    f4 = 4
    G = 4 * Hp
    ws = (nd * 2 * Tc * Bp * G * f4        # gx chunk streams (double-buffered)
          + nd * 2 * Tc * Bp * 1 * f4      # mask chunk streams
          + nd * 2 * Tc * Bp * Hp * f4     # output chunk streams
          + nd * Hp * G * f4               # resident W_hh (Buffered(1))
          + nd * 2 * 2 * Bp * Hp * f4      # h_n / c_n output buffers
          + nd * 2 * Bp * Hp * f4)         # carry scratch
    limit = int(ws * 1.4) + (4 << 20)      # ~40% + 4 MiB headroom
    return max(min(limit, 64 << 20), 16 << 20)


def _resident_spec(shape, index_map):
    """Constant-index (resident) input: single-buffer it when supported."""
    try:
        return pl.BlockSpec(shape, index_map, pipeline_mode=pl.Buffered(1))
    except TypeError:
        return pl.BlockSpec(shape, index_map)


# ----------------------------------------------------------------------------
# Pallas kernels
# ----------------------------------------------------------------------------
def _sigmoid(x):
    # single EUP op: sigma(x) = 0.5 * tanh(0.5 * x) + 0.5   (exact identity)
    return 0.5 * jnp.tanh(0.5 * x) + 0.5


def _lstm_cell_step(gx, whh, h, c, m):
    """One LSTM step. gx already holds x@W_ih^T + b_ih + b_hh. m is (B,1).
    Initial state is zero, so the module's mask blend reduces to h*m / c*m."""
    H = h.shape[-1]
    gates = gx + jnp.dot(h, whh, preferred_element_type=jnp.float32)
    i_g = _sigmoid(gates[:, 0 * H:1 * H])
    f_g = _sigmoid(gates[:, 1 * H:2 * H])
    g_g = jnp.tanh(gates[:, 2 * H:3 * H])
    o_g = _sigmoid(gates[:, 3 * H:4 * H])
    c_new = f_g * c + i_g * g_g
    h_new = o_g * jnp.tanh(c_new)
    return h_new * m, c_new * m


def _make_bidir_kernel(Tc):
    """Fused forward+backward recurrence over one time chunk per grid step.
    Tc divides T exactly -> no per-step validity selects."""

    def kernel(gxf_ref, gxb_ref, mf_ref, mb_ref, whhf_ref, whhb_ref,
               outf_ref, outb_ref, hnf_ref, cnf_ref, hnb_ref, cnb_ref,
               hf_sc, cf_sc, hb_sc, cb_sc):
        cidx = pl.program_id(0)
        nc = pl.num_programs(0)

        @pl.when(cidx == 0)
        def _():
            hf_sc[...] = jnp.zeros_like(hf_sc)
            cf_sc[...] = jnp.zeros_like(cf_sc)
            hb_sc[...] = jnp.zeros_like(hb_sc)
            cb_sc[...] = jnp.zeros_like(cb_sc)

        whhf = whhf_ref[...]          # hoisted out of the time loop (resident)
        whhb = whhb_ref[...]

        def body(l, carry):
            hf, cf, hb, cb = carry
            # forward: local step l -> global t = cidx*Tc + l
            hf_t, cf_t = _lstm_cell_step(gxf_ref[l], whhf, hf, cf, mf_ref[l])
            # backward: reversed chunk, local lb -> global t = (NC-1-cidx)*Tc + lb
            lb = Tc - 1 - l
            hb_t, cb_t = _lstm_cell_step(gxb_ref[lb], whhb, hb, cb, mb_ref[lb])
            outf_ref[l] = hf_t
            outb_ref[lb] = hb_t
            return hf_t, cf_t, hb_t, cb_t

        hf, cf, hb, cb = lax.fori_loop(
            0, Tc, body,
            (hf_sc[...], cf_sc[...], hb_sc[...], cb_sc[...]),
            unroll=True)

        hf_sc[...] = hf
        cf_sc[...] = cf
        hb_sc[...] = hb
        cb_sc[...] = cb

        @pl.when(cidx == nc - 1)
        def _():
            hnf_ref[...] = hf
            cnf_ref[...] = cf
            hnb_ref[...] = hb
            cnb_ref[...] = cb

    return kernel


def _make_unidir_kernel(Tc):
    def kernel(gx_ref, m_ref, whh_ref, out_ref, hn_ref, cn_ref, h_sc, c_sc):
        cidx = pl.program_id(0)
        nc = pl.num_programs(0)

        @pl.when(cidx == 0)
        def _():
            h_sc[...] = jnp.zeros_like(h_sc)
            c_sc[...] = jnp.zeros_like(c_sc)

        whh = whh_ref[...]

        def body(l, carry):
            h, c = carry
            h_t, c_t = _lstm_cell_step(gx_ref[l], whh, h, c, m_ref[l])
            out_ref[l] = h_t
            return h_t, c_t

        h, c = lax.fori_loop(0, Tc, body, (h_sc[...], c_sc[...]), unroll=True)
        h_sc[...] = h
        c_sc[...] = c

        @pl.when(cidx == nc - 1)
        def _():
            hn_ref[...] = h
            cn_ref[...] = c

    return kernel


# ----------------------------------------------------------------------------
# pallas_call wrappers
# ----------------------------------------------------------------------------
def _lstm_bidir_call(gx, mask_p, whh_f, whh_b, Tc, vmem_limit):
    """gx: (T, Bp, 8Hp) with fwd gates in columns [:4Hp], bwd in [4Hp:]."""
    T, Bp, G2 = gx.shape
    G = G2 // 2
    Hp = G // 4
    NC = T // Tc

    fwd3 = lambda c: (c, 0, 0)
    revg = lambda c: (NC - 1 - c, 0, 1)     # column block 1 -> bwd gate slab
    revm = lambda c: (NC - 1 - c, 0, 0)
    const2 = lambda c: (0, 0)

    grid_spec = pltpu.PrefetchScalarGridSpec(
        num_scalar_prefetch=0,
        grid=(NC,),
        in_specs=[
            pl.BlockSpec((Tc, Bp, G), fwd3),     # gx, forward chunks (fwd gates)
            pl.BlockSpec((Tc, Bp, G), revg),     # gx, reversed chunks (bwd gates)
            pl.BlockSpec((Tc, Bp, 1), fwd3),     # mask, forward order
            pl.BlockSpec((Tc, Bp, 1), revm),     # mask, reversed order
            _resident_spec((Hp, G), const2),     # W_hh fwd (resident, 1 buffer)
            _resident_spec((Hp, G), const2),     # W_hh bwd (resident, 1 buffer)
        ],
        out_specs=[
            pl.BlockSpec((Tc, Bp, Hp), fwd3),    # forward outputs
            pl.BlockSpec((Tc, Bp, Hp), revm),    # backward outputs
            pl.BlockSpec((Bp, Hp), const2),      # h_n fwd
            pl.BlockSpec((Bp, Hp), const2),      # c_n fwd
            pl.BlockSpec((Bp, Hp), const2),      # h_n bwd
            pl.BlockSpec((Bp, Hp), const2),      # c_n bwd
        ],
        scratch_shapes=[pltpu.VMEM((Bp, Hp), jnp.float32)] * 4,
    )
    out_shapes = (
        jax.ShapeDtypeStruct((T, Bp, Hp), jnp.float32),
        jax.ShapeDtypeStruct((T, Bp, Hp), jnp.float32),
        jax.ShapeDtypeStruct((Bp, Hp), jnp.float32),
        jax.ShapeDtypeStruct((Bp, Hp), jnp.float32),
        jax.ShapeDtypeStruct((Bp, Hp), jnp.float32),
        jax.ShapeDtypeStruct((Bp, Hp), jnp.float32),
    )
    return pl.pallas_call(
        _make_bidir_kernel(Tc),
        out_shape=out_shapes,
        grid_spec=grid_spec,
        compiler_params=pltpu.CompilerParams(
            dimension_semantics=("arbitrary",),
            vmem_limit_bytes=vmem_limit),
    )(gx, gx, mask_p, mask_p, whh_f, whh_b)


def _lstm_unidir_call(gx, mask_p, whh, Tc, vmem_limit):
    T, Bp, G = gx.shape
    Hp = G // 4
    NC = T // Tc
    fwd3 = lambda c: (c, 0, 0)
    const2 = lambda c: (0, 0)

    grid_spec = pltpu.PrefetchScalarGridSpec(
        num_scalar_prefetch=0,
        grid=(NC,),
        in_specs=[
            pl.BlockSpec((Tc, Bp, G), fwd3),
            pl.BlockSpec((Tc, Bp, 1), fwd3),
            _resident_spec((Hp, G), const2),
        ],
        out_specs=[
            pl.BlockSpec((Tc, Bp, Hp), fwd3),
            pl.BlockSpec((Bp, Hp), const2),
            pl.BlockSpec((Bp, Hp), const2),
        ],
        scratch_shapes=[pltpu.VMEM((Bp, Hp), jnp.float32)] * 2,
    )
    return pl.pallas_call(
        _make_unidir_kernel(Tc),
        out_shape=(jax.ShapeDtypeStruct((T, Bp, Hp), jnp.float32),
                   jax.ShapeDtypeStruct((Bp, Hp), jnp.float32),
                   jax.ShapeDtypeStruct((Bp, Hp), jnp.float32)),
        grid_spec=grid_spec,
        compiler_params=pltpu.CompilerParams(
            dimension_semantics=("arbitrary",),
            vmem_limit_bytes=vmem_limit),
    )(gx, mask_p, whh)


# ----------------------------------------------------------------------------
# Full forward (eval mode)
# ----------------------------------------------------------------------------
def mylstm_forward_pallas(prepped_params, x, masks, hidden_size, bidirectional,
                          batch_first=True, time_chunk=16):
    """x: (B,T,Din), masks: (B,T). Returns (output(T,B,ndir*H), (h_n, c_n))."""
    if batch_first:
        x = jnp.transpose(x, (1, 0, 2))               # (T,B,Din)
        masks = jnp.transpose(masks, (1, 0))          # (T,B)
    x = x.astype(jnp.float32)
    T, B, _ = x.shape
    H = hidden_size
    Hp = _round_up(H, 128)
    Bp = _round_up(B, 8)
    ND = 2 if bidirectional else 1

    Tc = _choose_time_chunk(T, max(1, min(time_chunk, T)), Bp, Hp, ND)
    vmem_limit = _vmem_limit(Tc, Bp, Hp, ND)

    # Pad batch ONCE. Padded rows carry mask 0 -> their states stay zero in the
    # kernel, and they are sliced off at the very end.
    x_p = _pad_axis(x, 1, Bp)                                        # (T, Bp, Din)
    mask_p = _pad_axis(masks.astype(jnp.float32)[:, :, None], 1, Bp) # (T, Bp, 1)

    h_n, c_n = [], []
    # Layer inputs kept in padded per-direction layout (no slice/concat between
    # layers): list of (T, Bp, F) arrays, one per source stream.
    layer_inputs = [x_p]
    for lp in prepped_params:
        # Hoisted input projection: one big MXU matmul per source stream for
        # ALL timesteps and BOTH directions at once -> (T, Bp, ND*4Hp).
        acc = None
        for src_x, w in zip(layer_inputs, lp['w_in']):
            t2d = src_x.reshape(T * Bp, src_x.shape[-1])
            part = jnp.dot(t2d, w, preferred_element_type=jnp.float32)
            acc = part if acc is None else acc + part
        gx = (acc + lp['bias']).reshape(T, Bp, ND * 4 * Hp)

        if bidirectional:
            outf, outb, hnf, cnf, hnb, cnb = _lstm_bidir_call(
                gx, mask_p, lp['whh'][0], lp['whh'][1], Tc, vmem_limit)
            h_n.append(jnp.concatenate([hnf[:B, :H], hnb[:B, :H]], axis=1))
            c_n.append(jnp.concatenate([cnf[:B, :H], cnb[:B, :H]], axis=1))
            layer_inputs = [outf, outb]          # stay padded; no HBM reshuffle
        else:
            out, hn, cn = _lstm_unidir_call(gx, mask_p, lp['whh'][0],
                                            Tc, vmem_limit)
            h_n.append(hn[:B, :H])
            c_n.append(cn[:B, :H])
            layer_inputs = [out]

    # Slice / concatenate ONCE at the very end.
    if bidirectional:
        output = jnp.concatenate([layer_inputs[0][:, :B, :H],
                                  layer_inputs[1][:, :B, :H]], axis=2)
    else:
        output = layer_inputs[0][:, :B, :H]
    return output, (jnp.stack(h_n, 0), jnp.stack(c_n, 0))


# ----------------------------------------------------------------------------
# Pure-JAX reference (mirrors the PyTorch forward, eval mode)
# ----------------------------------------------------------------------------
def _lstm_cell_ref(x, h, c, w_ih, w_hh, b_ih, b_hh):
    gates = x @ w_ih.T + b_ih + h @ w_hh.T + b_hh
    H = h.shape[-1]
    i = jax.nn.sigmoid(gates[:, :H])
    f = jax.nn.sigmoid(gates[:, H:2 * H])
    g = jnp.tanh(gates[:, 2 * H:3 * H])
    o = jax.nn.sigmoid(gates[:, 3 * H:])
    c_new = f * c + i * g
    return o * jnp.tanh(c_new), c_new


def _run_dir_ref(x, masks_bh, w_ih, w_hh, b_ih, b_hh, h0, c0, reverse):
    T = x.shape[0]
    outs = [None] * T
    h, c = h0, c0
    times = range(T - 1, -1, -1) if reverse else range(T)
    for t in times:
        h_new, c_new = _lstm_cell_ref(x[t], h, c, w_ih, w_hh, b_ih, b_hh)
        m = masks_bh[t]
        h = h_new * m + h0 * (1 - m)
        c = c_new * m + c0 * (1 - m)
        outs[t] = h
    return jnp.stack(outs, 0), h, c


def mylstm_forward_ref(params, x, masks, hidden_size, bidirectional,
                       batch_first=True):
    if batch_first:
        x = jnp.transpose(x, (1, 0, 2))
        masks = jnp.transpose(masks, (1, 0))[:, :, None]
    T, B, _ = x.shape
    H = hidden_size
    masks_bh = jnp.broadcast_to(masks, (T, B, H)).astype(jnp.float32)
    h0 = jnp.zeros((B, H), jnp.float32)
    c0 = jnp.zeros((B, H), jnp.float32)
    h_n, c_n = [], []
    inp = x
    for layer_p in params:
        f_out, f_hn, f_cn = _run_dir_ref(inp, masks_bh, *layer_p[0], h0, c0, False)
        if bidirectional:
            b_out, b_hn, b_cn = _run_dir_ref(inp, masks_bh, *layer_p[1], h0, c0, True)
            h_n.append(jnp.concatenate([f_hn, b_hn], axis=1))
            c_n.append(jnp.concatenate([f_cn, b_cn], axis=1))
            inp = jnp.concatenate([f_out, b_out], axis=2)
        else:
            h_n.append(f_hn)
            c_n.append(f_cn)
            inp = f_out
    return inp, (jnp.stack(h_n, 0), jnp.stack(c_n, 0))


# ----------------------------------------------------------------------------
if __name__ == "__main__":
    B, T, D, H, L = 2, 8, 16, 32, 2

    key = jax.random.PRNGKey(0)
    k1, k2 = jax.random.split(key)
    x = jax.random.normal(k1, (B, T, D), dtype=jnp.float32)
    masks = (jax.random.uniform(k2, (B, T)) > 0.2).astype(jnp.float32)

    for bidir, tchunk in ((True, 4), (False, 16)):   # tchunk=4 exercises NC=2
        params = build_params(D, H, L, bidir, seed=0)
        prepped = prepare_params(params, H)

        out, (h_n, c_n) = mylstm_forward_pallas(
            prepped, x, masks, H, bidir, batch_first=True, time_chunk=tchunk)
        jax.block_until_ready(out)

        out_r, (h_r, c_r) = mylstm_forward_ref(params, x, masks, H, bidir)
        np.testing.assert_allclose(np.asarray(out), np.asarray(out_r),
                                   rtol=2e-5, atol=5e-5)
        np.testing.assert_allclose(np.asarray(h_n), np.asarray(h_r),
                                   rtol=2e-5, atol=5e-5)
        np.testing.assert_allclose(np.asarray(c_n), np.asarray(c_r),
                                   rtol=2e-5, atol=5e-5)

    print("KERNEL_OK")
</pallas_src>

<mosaic_0001>
module attributes {stable_mosaic.version = 11 : i64} {
  func.func @kernel(%arg0: i32, %arg1: memref<4x8x512xf32, #tpu.memory_space<vmem>>, %arg2: memref<4x8x512xf32, #tpu.memory_space<vmem>>, %arg3: memref<4x8x1xf32, #tpu.memory_space<vmem>>, %arg4: memref<4x8x1xf32, #tpu.memory_space<vmem>>, %arg5: memref<128x512xf32, #tpu.memory_space<vmem>>, %arg6: memref<128x512xf32, #tpu.memory_space<vmem>>, %arg7: memref<4x8x128xf32, #tpu.memory_space<vmem>>, %arg8: memref<4x8x128xf32, #tpu.memory_space<vmem>>, %arg9: memref<8x128xf32, #tpu.memory_space<vmem>>, %arg10: memref<8x128xf32, #tpu.memory_space<vmem>>, %arg11: memref<8x128xf32, #tpu.memory_space<vmem>>, %arg12: memref<8x128xf32, #tpu.memory_space<vmem>>, %arg13: memref<8x128xf32, #tpu.memory_space<vmem>>, %arg14: memref<8x128xf32, #tpu.memory_space<vmem>>, %arg15: memref<8x128xf32, #tpu.memory_space<vmem>>, %arg16: memref<8x128xf32, #tpu.memory_space<vmem>>) attributes {dimension_semantics = [#tpu.dimension_semantics<arbitrary>], iteration_bounds = array<i64: 2>, scalar_prefetch = 0 : i64, scratch_operands = 4 : i64, tpu.core_type = #tpu.core_type<tc>, window_params = [{transform_indices = @transform_0, window_bounds = array<i64: 4, 8, 512>}, {transform_indices = @transform_1, window_bounds = array<i64: 4, 8, 512>}, {transform_indices = @transform_2, window_bounds = array<i64: 4, 8, 1>}, {transform_indices = @transform_3, window_bounds = array<i64: 4, 8, 1>}, {pipeline_mode = #tpu.pipeline_mode<synchronous>, transform_indices = @transform_4, window_bounds = array<i64: 128, 512>}, {pipeline_mode = #tpu.pipeline_mode<synchronous>, transform_indices = @transform_5, window_bounds = array<i64: 128, 512>}, {transform_indices = @transform_6, window_bounds = array<i64: 4, 8, 128>}, {transform_indices = @transform_7, window_bounds = array<i64: 4, 8, 128>}, {pipeline_mode = #tpu.pipeline_mode<synchronous>, transform_indices = @transform_8, window_bounds = array<i64: 8, 128>}, {pipeline_mode = #tpu.pipeline_mode<synchronous>, transform_indices = @transform_9, window_bounds = array<i64: 8, 128>}, {pipeline_mode = #tpu.pipeline_mode<synchronous>, transform_indices = @transform_10, window_bounds = array<i64: 8, 128>}, {pipeline_mode = #tpu.pipeline_mode<synchronous>, transform_indices = @transform_11, window_bounds = array<i64: 8, 128>}]} {
    %c0_i32 = arith.constant 0 : i32
    %0 = arith.cmpi eq, %arg0, %c0_i32 : i32
    %1 = arith.extui %0 : i1 to i32
    %c0_i32_0 = arith.constant 0 : i32
    %2 = arith.cmpi ne, %1, %c0_i32_0 : i32
    scf.if %2 {
      %cst_154 = arith.constant 0.000000e+00 : f32
      %396 = vector.broadcast %cst_154 : f32 to vector<8x128xf32>
      %c0_155 = arith.constant 0 : index
      %c0_156 = arith.constant 0 : index
      %397 = vector.load %arg13[%c0_155, %c0_156] : memref<8x128xf32, #tpu.memory_space<vmem>>, vector<8x128xf32>
      tpu.vector_store %arg13[%c0_155, %c0_156], %396 {strides = array<i32>} : memref<8x128xf32, #tpu.memory_space<vmem>>, vector<8x128xf32>,
      %cst_157 = arith.constant 0.000000e+00 : f32
      %398 = vector.broadcast %cst_157 : f32 to vector<8x128xf32>
      %c0_158 = arith.constant 0 : index
      %c0_159 = arith.constant 0 : index
      %399 = vector.load %arg14[%c0_158, %c0_159] : memref<8x128xf32, #tpu.memory_space<vmem>>, vector<8x128xf32>
      tpu.vector_store %arg14[%c0_158, %c0_159], %398 {strides = array<i32>} : memref<8x128xf32, #tpu.memory_space<vmem>>, vector<8x128xf32>,
      %cst_160 = arith.constant 0.000000e+00 : f32
      %400 = vector.broadcast %cst_160 : f32 to vector<8x128xf32>
      %c0_161 = arith.constant 0 : index
      %c0_162 = arith.constant 0 : index
      %401 = vector.load %arg15[%c0_161, %c0_162] : memref<8x128xf32, #tpu.memory_space<vmem>>, vector<8x128xf32>
      tpu.vector_store %arg15[%c0_161, %c0_162], %400 {strides = array<i32>} : memref<8x128xf32, #tpu.memory_space<vmem>>, vector<8x128xf32>,
      %cst_163 = arith.constant 0.000000e+00 : f32
      %402 = vector.broadcast %cst_163 : f32 to vector<8x128xf32>
      %c0_164 = arith.constant 0 : index
      %c0_165 = arith.constant 0 : index
      %403 = vector.load %arg16[%c0_164, %c0_165] : memref<8x128xf32, #tpu.memory_space<vmem>>, vector<8x128xf32>
      tpu.vector_store %arg16[%c0_164, %c0_165], %402 {strides = array<i32>} : memref<8x128xf32, #tpu.memory_space<vmem>>, vector<8x128xf32>,
    } else {
    }
    %c0 = arith.constant 0 : index
    %c0_1 = arith.constant 0 : index
    %3 = vector.load %arg5[%c0, %c0_1] : memref<128x512xf32, #tpu.memory_space<vmem>>, vector<128x512xf32>
    %c0_2 = arith.constant 0 : index
    %c0_3 = arith.constant 0 : index
    %4 = vector.load %arg6[%c0_2, %c0_3] : memref<128x512xf32, #tpu.memory_space<vmem>>, vector<128x512xf32>
    %c0_4 = arith.constant 0 : index
    %c0_5 = arith.constant 0 : index
    %5 = vector.load %arg13[%c0_4, %c0_5] : memref<8x128xf32, #tpu.memory_space<vmem>>, vector<8x128xf32>
    %c0_6 = arith.constant 0 : index
    %c0_7 = arith.constant 0 : index
    %6 = vector.load %arg14[%c0_6, %c0_7] : memref<8x128xf32, #tpu.memory_space<vmem>>, vector<8x128xf32>
    %c0_8 = arith.constant 0 : index
    %c0_9 = arith.constant 0 : index
    %7 = vector.load %arg15[%c0_8, %c0_9] : memref<8x128xf32, #tpu.memory_space<vmem>>, vector<8x128xf32>
    %c0_10 = arith.constant 0 : index
    %c0_11 = arith.constant 0 : index
    %8 = vector.load %arg16[%c0_10, %c0_11] : memref<8x128xf32, #tpu.memory_space<vmem>>, vector<8x128xf32>
    %c0_i32_12 = arith.constant 0 : i32
    %9 = arith.index_cast %c0_i32_12 : i32 to index
    %c0_13 = arith.constant 0 : index
    %c0_14 = arith.constant 0 : index
    %10 = vector.load %arg1[%9, %c0_13, %c0_14] : memref<4x8x512xf32, #tpu.memory_space<vmem>>, vector<1x8x512xf32>
    %11 = vector.shape_cast %10 : vector<1x8x512xf32> to vector<8x512xf32>
    %12 = arith.index_cast %c0_i32_12 : i32 to index
    %c0_15 = arith.constant 0 : index
    %c0_16 = arith.constant 0 : index
    %13 = vector.load %arg3[%12, %c0_15, %c0_16] : memref<4x8x1xf32, #tpu.memory_space<vmem>>, vector<1x8x1xf32>
    %14 = vector.shape_cast %13 : vector<1x8x1xf32> to vector<8x1xf32>
    %cst = arith.constant dense<0.000000e+00> : vector<8x512xf32>
    %15 = tpu.matmul %5, %3, %cst {dimension_numbers = #tpu.dot_dimension_numbers<[1], [0], [0], [1], [0, 0, 1, 1], [], []>} : vector<8x128xf32>, vector<128x512xf32>, vector<8x512xf32> -> vector<8x512xf32>
    %16 = arith.addf %11, %15 : vector<8x512xf32>
    %17 = vector.extract_strided_slice %16 {offsets = [0, 0], sizes = [8, 128], strides = [1, 1]} : vector<8x512xf32> to vector<8x128xf32>
    %cst_17 = arith.constant 5.000000e-01 : f32
    %18 = vector.broadcast %cst_17 : f32 to vector<8x128xf32>
    %19 = arith.mulf %18, %17 : vector<8x128xf32>
    %20 = math.tanh %19 : vector<8x128xf32>
    %cst_18 = arith.constant 5.000000e-01 : f32
    %21 = vector.broadcast %cst_18 : f32 to vector<8x128xf32>
    %22 = arith.mulf %21, %20 : vector<8x128xf32>
    %cst_19 = arith.constant 5.000000e-01 : f32
    %23 = vector.broadcast %cst_19 : f32 to vector<8x128xf32>
    %24 = arith.addf %22, %23 : vector<8x128xf32>
    %25 = vector.extract_strided_slice %16 {offsets = [0, 128], sizes = [8, 128], strides = [1, 1]} : vector<8x512xf32> to vector<8x128xf32>
    %cst_20 = arith.constant 5.000000e-01 : f32
    %26 = vector.broadcast %cst_20 : f32 to vector<8x128xf32>
    %27 = arith.mulf %26, %25 : vector<8x128xf32>
    %28 = math.tanh %27 : vector<8x128xf32>
    %cst_21 = arith.constant 5.000000e-01 : f32
    %29 = vector.broadcast %cst_21 : f32 to vector<8x128xf32>
    %30 = arith.mulf %29, %28 : vector<8x128xf32>
    %cst_22 = arith.constant 5.000000e-01 : f32
    %31 = vector.broadcast %cst_22 : f32 to vector<8x128xf32>
    %32 = arith.addf %30, %31 : vector<8x128xf32>
    %33 = vector.extract_strided_slice %16 {offsets = [0, 256], sizes = [8, 128], strides = [1, 1]} : vector<8x512xf32> to vector<8x128xf32>
    %34 = math.tanh %33 : vector<8x128xf32>
    %35 = vector.extract_strided_slice %16 {offsets = [0, 384], sizes = [8, 128], strides = [1, 1]} : vector<8x512xf32> to vector<8x128xf32>
    %cst_23 = arith.constant 5.000000e-01 : f32
    %36 = vector.broadcast %cst_23 : f32 to vector<8x128xf32>
    %37 = arith.mulf %36, %35 : vector<8x128xf32>
    %38 = math.tanh %37 : vector<8x128xf32>
    %cst_24 = arith.constant 5.000000e-01 : f32
    %39 = vector.broadcast %cst_24 : f32 to vector<8x128xf32>
    %40 = arith.mulf %39, %38 : vector<8x128xf32>
    %cst_25 = arith.constant 5.000000e-01 : f32
    %41 = vector.broadcast %cst_25 : f32 to vector<8x128xf32>
    %42 = arith.addf %40, %41 : vector<8x128xf32>
    %43 = arith.mulf %32, %6 : vector<8x128xf32>
    %44 = arith.mulf %24, %34 : vector<8x128xf32>
    %45 = arith.addf %43, %44 : vector<8x128xf32>
    %46 = math.tanh %45 : vector<8x128xf32>
    %47 = arith.mulf %42, %46 : vector<8x128xf32>
    %48 = vector.broadcast %14 : vector<8x1xf32> to vector<8x128xf32>
    %49 = arith.mulf %47, %48 : vector<8x128xf32>
    %50 = vector.broadcast %14 : vector<8x1xf32> to vector<8x128xf32>
    %51 = arith.mulf %45, %50 : vector<8x128xf32>
    %c3_i32 = arith.constant 3 : i32
    %52 = arith.subi %c3_i32, %c0_i32_12 : i32
    %53 = arith.index_cast %52 : i32 to index
    %c0_26 = arith.constant 0 : index
    %c0_27 = arith.constant 0 : index
    %54 = vector.load %arg2[%53, %c0_26, %c0_27] : memref<4x8x512xf32, #tpu.memory_space<vmem>>, vector<1x8x512xf32>
    %55 = vector.shape_cast %54 : vector<1x8x512xf32> to vector<8x512xf32>
    %56 = arith.index_cast %52 : i32 to index
    %c0_28 = arith.constant 0 : index
    %c0_29 = arith.constant 0 : index
    %57 = vector.load %arg4[%56, %c0_28, %c0_29] : memref<4x8x1xf32, #tpu.memory_space<vmem>>, vector<1x8x1xf32>
    %58 = vector.shape_cast %57 : vector<1x8x1xf32> to vector<8x1xf32>
    %cst_30 = arith.constant dense<0.000000e+00> : vector<8x512xf32>
    %59 = tpu.matmul %7, %4, %cst_30 {dimension_numbers = #tpu.dot_dimension_numbers<[1], [0], [0], [1], [0, 0, 1, 1], [], []>} : vector<8x128xf32>, vector<128x512xf32>, vector<8x512xf32> -> vector<8x512xf32>
    %60 = arith.addf %55, %59 : vector<8x512xf32>
    %61 = vector.extract_strided_slice %60 {offsets = [0, 0], sizes = [8, 128], strides = [1, 1]} : vector<8x512xf32> to vector<8x128xf32>
    %cst_31 = arith.constant 5.000000e-01 : f32
    %62 = vector.broadcast %cst_31 : f32 to vector<8x128xf32>
    %63 = arith.mulf %62, %61 : vector<8x128xf32>
    %64 = math.tanh %63 : vector<8x128xf32>
    %cst_32 = arith.constant 5.000000e-01 : f32
    %65 = vector.broadcast %cst_32 : f32 to vector<8x128xf32>
    %66 = arith.mulf %65, %64 : vector<8x128xf32>
    %cst_33 = arith.constant 5.000000e-01 : f32
    %67 = vector.broadcast %cst_33 : f32 to vector<8x128xf32>
    %68 = arith.addf %66, %67 : vector<8x128xf32>
    %69 = vector.extract_strided_slice %60 {offsets = [0, 128], sizes = [8, 128], strides = [1, 1]} : vector<8x512xf32> to vector<8x128xf32>
    %cst_34 = arith.constant 5.000000e-01 : f32
    %70 = vector.broadcast %cst_34 : f32 to vector<8x128xf32>
    %71 = arith.mulf %70, %69 : vector<8x128xf32>
    %72 = math.tanh %71 : vector<8x128xf32>
    %cst_35 = arith.constant 5.000000e-01 : f32
    %73 = vector.broadcast %cst_35 : f32 to vector<8x128xf32>
    %74 = arith.mulf %73, %72 : vector<8x128xf32>
    %cst_36 = arith.constant 5.000000e-01 : f32
    %75 = vector.broadcast %cst_36 : f32 to vector<8x128xf32>
    %76 = arith.addf %74, %75 : vector<8x128xf32>
    %77 = vector.extract_strided_slice %60 {offsets = [0, 256], sizes = [8, 128], strides = [1, 1]} : vector<8x512xf32> to vector<8x128xf32>
    %78 = math.tanh %77 : vector<8x128xf32>
    %79 = vector.extract_strided_slice %60 {offsets = [0, 384], sizes = [8, 128], strides = [1, 1]} : vector<8x512xf32> to vector<8x128xf32>
    %cst_37 = arith.constant 5.000000e-01 : f32
    %80 = vector.broadcast %cst_37 : f32 to vector<8x128xf32>
    %81 = arith.mulf %80, %79 : vector<8x128xf32>
    %82 = math.tanh %81 : vector<8x128xf32>
    %cst_38 = arith.constant 5.000000e-01 : f32
    %83 = vector.broadcast %cst_38 : f32 to vector<8x128xf32>
    %84 = arith.mulf %83, %82 : vector<8x128xf32>
    %cst_39 = arith.constant 5.000000e-01 : f32
    %85 = vector.broadcast %cst_39 : f32 to vector<8x128xf32>
    %86 = arith.addf %84, %85 : vector<8x128xf32>
    %87 = arith.mulf %76, %8 : vector<8x128xf32>
    %88 = arith.mulf %68, %78 : vector<8x128xf32>
    %89 = arith.addf %87, %88 : vector<8x128xf32>
    %90 = math.tanh %89 : vector<8x128xf32>
    %91 = arith.mulf %86, %90 : vector<8x128xf32>
    %92 = vector.broadcast %58 : vector<8x1xf32> to vector<8x128xf32>
    %93 = arith.mulf %91, %92 : vector<8x128xf32>
    %94 = vector.broadcast %58 : vector<8x1xf32> to vector<8x128xf32>
    %95 = arith.mulf %89, %94 : vector<8x128xf32>
    %96 = arith.index_cast %c0_i32_12 : i32 to index
    %c0_40 = arith.constant 0 : index
    %c0_41 = arith.constant 0 : index
    %97 = vector.load %arg7[%96, %c0_40, %c0_41] : memref<4x8x128xf32, #tpu.memory_space<vmem>>, vector<1x8x128xf32>
    %98 = vector.shape_cast %97 : vector<1x8x128xf32> to vector<8x128xf32>
    %99 = vector.shape_cast %49 : vector<8x128xf32> to vector<1x8x128xf32>
    tpu.vector_store %arg7[%96, %c0_40, %c0_41], %99 {strides = array<i32>} : memref<4x8x128xf32, #tpu.memory_space<vmem>>, vector<1x8x128xf32>,
    %100 = arith.index_cast %52 : i32 to index
    %c0_42 = arith.constant 0 : index
    %c0_43 = arith.constant 0 : index
    %101 = vector.load %arg8[%100, %c0_42, %c0_43] : memref<4x8x128xf32, #tpu.memory_space<vmem>>, vector<1x8x128xf32>
    %102 = vector.shape_cast %101 : vector<1x8x128xf32> to vector<8x128xf32>
    %103 = vector.shape_cast %93 : vector<8x128xf32> to vector<1x8x128xf32>
    tpu.vector_store %arg8[%100, %c0_42, %c0_43], %103 {strides = array<i32>} : memref<4x8x128xf32, #tpu.memory_space<vmem>>, vector<1x8x128xf32>,
    %c1_i32 = arith.constant 1 : i32
    %104 = arith.index_cast %c1_i32 : i32 to index
    %c0_44 = arith.constant 0 : index
    %c0_45 = arith.constant 0 : index
    %105 = vector.load %arg1[%104, %c0_44, %c0_45] : memref<4x8x512xf32, #tpu.memory_space<vmem>>, vector<1x8x512xf32>
    %106 = vector.shape_cast %105 : vector<1x8x512xf32> to vector<8x512xf32>
    %107 = arith.index_cast %c1_i32 : i32 to index
    %c0_46 = arith.constant 0 : index
    %c0_47 = arith.constant 0 : index
    %108 = vector.load %arg3[%107, %c0_46, %c0_47] : memref<4x8x1xf32, #tpu.memory_space<vmem>>, vector<1x8x1xf32>
    %109 = vector.shape_cast %108 : vector<1x8x1xf32> to vector<8x1xf32>
    %cst_48 = arith.constant dense<0.000000e+00> : vector<8x512xf32>
    %110 = tpu.matmul %49, %3, %cst_48 {dimension_numbers = #tpu.dot_dimension_numbers<[1], [0], [0], [1], [0, 0, 1, 1], [], []>} : vector<8x128xf32>, vector<128x512xf32>, vector<8x512xf32> -> vector<8x512xf32>
    %111 = arith.addf %106, %110 : vector<8x512xf32>
    %112 = vector.extract_strided_slice %111 {offsets = [0, 0], sizes = [8, 128], strides = [1, 1]} : vector<8x512xf32> to vector<8x128xf32>
    %cst_49 = arith.constant 5.000000e-01 : f32
    %113 = vector.broadcast %cst_49 : f32 to vector<8x128xf32>
    %114 = arith.mulf %113, %112 : vector<8x128xf32>
    %115 = math.tanh %114 : vector<8x128xf32>
    %cst_50 = arith.constant 5.000000e-01 : f32
    %116 = vector.broadcast %cst_50 : f32 to vector<8x128xf32>
    %117 = arith.mulf %116, %115 : vector<8x128xf32>
    %cst_51 = arith.constant 5.000000e-01 : f32
    %118 = vector.broadcast %cst_51 : f32 to vector<8x128xf32>
    %119 = arith.addf %117, %118 : vector<8x128xf32>
    %120 = vector.extract_strided_slice %111 {offsets = [0, 128], sizes = [8, 128], strides = [1, 1]} : vector<8x512xf32> to vector<8x128xf32>
    %cst_52 = arith.constant 5.000000e-01 : f32
    %121 = vector.broadcast %cst_52 : f32 to vector<8x128xf32>
    %122 = arith.mulf %121, %120 : vector<8x128xf32>
    %123 = math.tanh %122 : vector<8x128xf32>
    %cst_53 = arith.constant 5.000000e-01 : f32
    %124 = vector.broadcast %cst_53 : f32 to vector<8x128xf32>
    %125 = arith.mulf %124, %123 : vector<8x128xf32>
    %cst_54 = arith.constant 5.000000e-01 : f32
    %126 = vector.broadcast %cst_54 : f32 to vector<8x128xf32>
    %127 = arith.addf %125, %126 : vector<8x128xf32>
    %128 = vector.extract_strided_slice %111 {offsets = [0, 256], sizes = [8, 128], strides = [1, 1]} : vector<8x512xf32> to vector<8x128xf32>
    %129 = math.tanh %128 : vector<8x128xf32>
    %130 = vector.extract_strided_slice %111 {offsets = [0, 384], sizes = [8, 128], strides = [1, 1]} : vector<8x512xf32> to vector<8x128xf32>
    %cst_55 = arith.constant 5.000000e-01 : f32
    %131 = vector.broadcast %cst_55 : f32 to vector<8x128xf32>
    %132 = arith.mulf %131, %130 : vector<8x128xf32>
    %133 = math.tanh %132 : vector<8x128xf32>
    %cst_56 = arith.constant 5.000000e-01 : f32
    %134 = vector.broadcast %cst_56 : f32 to vector<8x128xf32>
    %135 = arith.mulf %134, %133 : vector<8x128xf32>
    %cst_57 = arith.constant 5.000000e-01 : f32
    %136 = vector.broadcast %cst_57 : f32 to vector<8x128xf32>
    %137 = arith.addf %135, %136 : vector<8x128xf32>
    %138 = arith.mulf %127, %51 : vector<8x128xf32>
    %139 = arith.mulf %119, %129 : vector<8x128xf32>
    %140 = arith.addf %138, %139 : vector<8x128xf32>
    %141 = math.tanh %140 : vector<8x128xf32>
    %142 = arith.mulf %137, %141 : vector<8x128xf32>
    %143 = vector.broadcast %109 : vector<8x1xf32> to vector<8x128xf32>
    %144 = arith.mulf %142, %143 : vector<8x128xf32>
    %145 = vector.broadcast %109 : vector<8x1xf32> to vector<8x128xf32>
    %146 = arith.mulf %140, %145 : vector<8x128xf32>
    %c3_i32_58 = arith.constant 3 : i32
    %147 = arith.subi %c3_i32_58, %c1_i32 : i32
    %148 = arith.index_cast %147 : i32 to index
    %c0_59 = arith.constant 0 : index
    %c0_60 = arith.constant 0 : index
    %149 = vector.load %arg2[%148, %c0_59, %c0_60] : memref<4x8x512xf32, #tpu.memory_space<vmem>>, vector<1x8x512xf32>
    %150 = vector.shape_cast %149 : vector<1x8x512xf32> to vector<8x512xf32>
    %151 = arith.index_cast %147 : i32 to index
    %c0_61 = arith.constant 0 : index
    %c0_62 = arith.constant 0 : index
    %152 = vector.load %arg4[%151, %c0_61, %c0_62] : memref<4x8x1xf32, #tpu.memory_space<vmem>>, vector<1x8x1xf32>
    %153 = vector.shape_cast %152 : vector<1x8x1xf32> to vector<8x1xf32>
    %cst_63 = arith.constant dense<0.000000e+00> : vector<8x512xf32>
    %154 = tpu.matmul %93, %4, %cst_63 {dimension_numbers = #tpu.dot_dimension_numbers<[1], [0], [0], [1], [0, 0, 1, 1], [], []>} : vector<8x128xf32>, vector<128x512xf32>, vector<8x512xf32> -> vector<8x512xf32>
    %155 = arith.addf %150, %154 : vector<8x512xf32>
    %156 = vector.extract_strided_slice %155 {offsets = [0, 0], sizes = [8, 128], strides = [1, 1]} : vector<8x512xf32> to vector<8x128xf32>
    %cst_64 = arith.constant 5.000000e-01 : f32
    %157 = vector.broadcast %cst_64 : f32 to vector<8x128xf32>
    %158 = arith.mulf %157, %156 : vector<8x128xf32>
    %159 = math.tanh %158 : vector<8x128xf32>
    %cst_65 = arith.constant 5.000000e-01 : f32
    %160 = vector.broadcast %cst_65 : f32 to vector<8x128xf32>
    %161 = arith.mulf %160, %159 : vector<8x128xf32>
    %cst_66 = arith.constant 5.000000e-01 : f32
    %162 = vector.broadcast %cst_66 : f32 to vector<8x128xf32>
    %163 = arith.addf %161, %162 : vector<8x128xf32>
    %164 = vector.extract_strided_slice %155 {offsets = [0, 128], sizes = [8, 128], strides = [1, 1]} : vector<8x512xf32> to vector<8x128xf32>
    %cst_67 = arith.constant 5.000000e-01 : f32
    %165 = vector.broadcast %cst_67 : f32 to vector<8x128xf32>
    %166 = arith.mulf %165, %164 : vector<8x128xf32>
    %167 = math.tanh %166 : vector<8x128xf32>
    %cst_68 = arith.constant 5.000000e-01 : f32
    %168 = vector.broadcast %cst_68 : f32 to vector<8x128xf32>
    %169 = arith.mulf %168, %167 : vector<8x128xf32>
    %cst_69 = arith.constant 5.000000e-01 : f32
    %170 = vector.broadcast %cst_69 : f32 to vector<8x128xf32>
    %171 = arith.addf %169, %170 : vector<8x128xf32>
    %172 = vector.extract_strided_slice %155 {offsets = [0, 256], sizes = [8, 128], strides = [1, 1]} : vector<8x512xf32> to vector<8x128xf32>
    %173 = math.tanh %172 : vector<8x128xf32>
    %174 = vector.extract_strided_slice %155 {offsets = [0, 384], sizes = [8, 128], strides = [1, 1]} : vector<8x512xf32> to vector<8x128xf32>
    %cst_70 = arith.constant 5.000000e-01 : f32
    %175 = vector.broadcast %cst_70 : f32 to vector<8x128xf32>
    %176 = arith.mulf %175, %174 : vector<8x128xf32>
    %177 = math.tanh %176 : vector<8x128xf32>
    %cst_71 = arith.constant 5.000000e-01 : f32
    %178 = vector.broadcast %cst_71 : f32 to vector<8x128xf32>
    %179 = arith.mulf %178, %177 : vector<8x128xf32>
    %cst_72 = arith.constant 5.000000e-01 : f32
    %180 = vector.broadcast %cst_72 : f32 to vector<8x128xf32>
    %181 = arith.addf %179, %180 : vector<8x128xf32>
    %182 = arith.mulf %171, %95 : vector<8x128xf32>
    %183 = arith.mulf %163, %173 : vector<8x128xf32>
    %184 = arith.addf %182, %183 : vector<8x128xf32>
    %185 = math.tanh %184 : vector<8x128xf32>
    %186 = arith.mulf %181, %185 : vector<8x128xf32>
    %187 = vector.broadcast %153 : vector<8x1xf32> to vector<8x128xf32>
    %188 = arith.mulf %186, %187 : vector<8x128xf32>
    %189 = vector.broadcast %153 : vector<8x1xf32> to vector<8x128xf32>
    %190 = arith.mulf %184, %189 : vector<8x128xf32>
    %191 = arith.index_cast %c1_i32 : i32 to index
    %c0_73 = arith.constant 0 : index
    %c0_74 = arith.constant 0 : index
    %192 = vector.load %arg7[%191, %c0_73, %c0_74] : memref<4x8x128xf32, #tpu.memory_space<vmem>>, vector<1x8x128xf32>
    %193 = vector.shape_cast %192 : vector<1x8x128xf32> to vector<8x128xf32>
    %194 = vector.shape_cast %144 : vector<8x128xf32> to vector<1x8x128xf32>
    tpu.vector_store %arg7[%191, %c0_73, %c0_74], %194 {strides = array<i32>} : memref<4x8x128xf32, #tpu.memory_space<vmem>>, vector<1x8x128xf32>,
    %195 = arith.index_cast %147 : i32 to index
    %c0_75 = arith.constant 0 : index
    %c0_76 = arith.constant 0 : index
    %196 = vector.load %arg8[%195, %c0_75, %c0_76] : memref<4x8x128xf32, #tpu.memory_space<vmem>>, vector<1x8x128xf32>
    %197 = vector.shape_cast %196 : vector<1x8x128xf32> to vector<8x128xf32>
    %198 = vector.shape_cast %188 : vector<8x128xf32> to vector<1x8x128xf32>
    tpu.vector_store %arg8[%195, %c0_75, %c0_76], %198 {strides = array<i32>} : memref<4x8x128xf32, #tpu.memory_space<vmem>>, vector<1x8x128xf32>,
    %c2_i32 = arith.constant 2 : i32
    %199 = arith.index_cast %c2_i32 : i32 to index
    %c0_77 = arith.constant 0 : index
    %c0_78 = arith.constant 0 : index
    %200 = vector.load %arg1[%199, %c0_77, %c0_78] : memref<4x8x512xf32, #tpu.memory_space<vmem>>, vector<1x8x512xf32>
    %201 = vector.shape_cast %200 : vector<1x8x512xf32> to vector<8x512xf32>
    %202 = arith.index_cast %c2_i32 : i32 to index
    %c0_79 = arith.constant 0 : index
    %c0_80 = arith.constant 0 : index
    %203 = vector.load %arg3[%202, %c0_79, %c0_80] : memref<4x8x1xf32, #tpu.memory_space<vmem>>, vector<1x8x1xf32>
    %204 = vector.shape_cast %203 : vector<1x8x1xf32> to vector<8x1xf32>
    %cst_81 = arith.constant dense<0.000000e+00> : vector<8x512xf32>
    %205 = tpu.matmul %144, %3, %cst_81 {dimension_numbers = #tpu.dot_dimension_numbers<[1], [0], [0], [1], [0, 0, 1, 1], [], []>} : vector<8x128xf32>, vector<128x512xf32>, vector<8x512xf32> -> vector<8x512xf32>
    %206 = arith.addf %201, %205 : vector<8x512xf32>
    %207 = vector.extract_strided_slice %206 {offsets = [0, 0], sizes = [8, 128], strides = [1, 1]} : vector<8x512xf32> to vector<8x128xf32>
    %cst_82 = arith.constant 5.000000e-01 : f32
    %208 = vector.broadcast %cst_82 : f32 to vector<8x128xf32>
    %209 = arith.mulf %208, %207 : vector<8x128xf32>
    %210 = math.tanh %209 : vector<8x128xf32>
    %cst_83 = arith.constant 5.000000e-01 : f32
    %211 = vector.broadcast %cst_83 : f32 to vector<8x128xf32>
    %212 = arith.mulf %211, %210 : vector<8x128xf32>
    %cst_84 = arith.constant 5.000000e-01 : f32
    %213 = vector.broadcast %cst_84 : f32 to vector<8x128xf32>
    %214 = arith.addf %212, %213 : vector<8x128xf32>
    %215 = vector.extract_strided_slice %206 {offsets = [0, 128], sizes = [8, 128], strides = [1, 1]} : vector<8x512xf32> to vector<8x128xf32>
    %cst_85 = arith.constant 5.000000e-01 : f32
    %216 = vector.broadcast %cst_85 : f32 to vector<8x128xf32>
    %217 = arith.mulf %216, %215 : vector<8x128xf32>
    %218 = math.tanh %217 : vector<8x128xf32>
    %cst_86 = arith.constant 5.000000e-01 : f32
    %219 = vector.broadcast %cst_86 : f32 to vector<8x128xf32>
    %220 = arith.mulf %219, %218 : vector<8x128xf32>
    %cst_87 = arith.constant 5.000000e-01 : f32
    %221 = vector.broadcast %cst_87 : f32 to vector<8x128xf32>
    %222 = arith.addf %220, %221 : vector<8x128xf32>
    %223 = vector.extract_strided_slice %206 {offsets = [0, 256], sizes = [8, 128], strides = [1, 1]} : vector<8x512xf32> to vector<8x128xf32>
    %224 = math.tanh %223 : vector<8x128xf32>
    %225 = vector.extract_strided_slice %206 {offsets = [0, 384], sizes = [8, 128], strides = [1, 1]} : vector<8x512xf32> to vector<8x128xf32>
    %cst_88 = arith.constant 5.000000e-01 : f32
    %226 = vector.broadcast %cst_88 : f32 to vector<8x128xf32>
    %227 = arith.mulf %226, %225 : vector<8x128xf32>
    %228 = math.tanh %227 : vector<8x128xf32>
    %cst_89 = arith.constant 5.000000e-01 : f32
    %229 = vector.broadcast %cst_89 : f32 to vector<8x128xf32>
    %230 = arith.mulf %229, %228 : vector<8x128xf32>
    %cst_90 = arith.constant 5.000000e-01 : f32
    %231 = vector.broadcast %cst_90 : f32 to vector<8x128xf32>
    %232 = arith.addf %230, %231 : vector<8x128xf32>
    %233 = arith.mulf %222, %146 : vector<8x128xf32>
    %234 = arith.mulf %214, %224 : vector<8x128xf32>
    %235 = arith.addf %233, %234 : vector<8x128xf32>
    %236 = math.tanh %235 : vector<8x128xf32>
    %237 = arith.mulf %232, %236 : vector<8x128xf32>
    %238 = vector.broadcast %204 : vector<8x1xf32> to vector<8x128xf32>
    %239 = arith.mulf %237, %238 : vector<8x128xf32>
    %240 = vector.broadcast %204 : vector<8x1xf32> to vector<8x128xf32>
    %241 = arith.mulf %235, %240 : vector<8x128xf32>
    %c3_i32_91 = arith.constant 3 : i32
    %242 = arith.subi %c3_i32_91, %c2_i32 : i32
    %243 = arith.index_cast %242 : i32 to index
    %c0_92 = arith.constant 0 : index
    %c0_93 = arith.constant 0 : index
    %244 = vector.load %arg2[%243, %c0_92, %c0_93] : memref<4x8x512xf32, #tpu.memory_space<vmem>>, vector<1x8x512xf32>
    %245 = vector.shape_cast %244 : vector<1x8x512xf32> to vector<8x512xf32>
    %246 = arith.index_cast %242 : i32 to index
    %c0_94 = arith.constant 0 : index
    %c0_95 = arith.constant 0 : index
    %247 = vector.load %arg4[%246, %c0_94, %c0_95] : memref<4x8x1xf32, #tpu.memory_space<vmem>>, vector<1x8x1xf32>
    %248 = vector.shape_cast %247 : vector<1x8x1xf32> to vector<8x1xf32>
    %cst_96 = arith.constant dense<0.000000e+00> : vector<8x512xf32>
    %249 = tpu.matmul %188, %4, %cst_96 {dimension_numbers = #tpu.dot_dimension_numbers<[1], [0], [0], [1], [0, 0, 1, 1], [], []>} : vector<8x128xf32>, vector<128x512xf32>, vector<8x512xf32> -> vector<8x512xf32>
    %250 = arith.addf %245, %249 : vector<8x512xf32>
    %251 = vector.extract_strided_slice %250 {offsets = [0, 0], sizes = [8, 128], strides = [1, 1]} : vector<8x512xf32> to vector<8x128xf32>
    %cst_97 = arith.constant 5.000000e-01 : f32
    %252 = vector.broadcast %cst_97 : f32 to vector<8x128xf32>
    %253 = arith.mulf %252, %251 : vector<8x128xf32>
    %254 = math.tanh %253 : vector<8x128xf32>
    %cst_98 = arith.constant 5.000000e-01 : f32
    %255 = vector.broadcast %cst_98 : f32 to vector<8x128xf32>
    %256 = arith.mulf %255, %254 : vector<8x128xf32>
    %cst_99 = arith.constant 5.000000e-01 : f32
    %257 = vector.broadcast %cst_99 : f32 to vector<8x128xf32>
    %258 = arith.addf %256, %257 : vector<8x128xf32>
    %259 = vector.extract_strided_slice %250 {offsets = [0, 128], sizes = [8, 128], strides = [1, 1]} : vector<8x512xf32> to vector<8x128xf32>
    %cst_100 = arith.constant 5.000000e-01 : f32
    %260 = vector.broadcast %cst_100 : f32 to vector<8x128xf32>
    %261 = arith.mulf %260, %259 : vector<8x128xf32>
    %262 = math.tanh %261 : vector<8x128xf32>
    %cst_101 = arith.constant 5.000000e-01 : f32
    %263 = vector.broadcast %cst_101 : f32 to vector<8x128xf32>
    %264 = arith.mulf %263, %262 : vector<8x128xf32>
    %cst_102 = arith.constant 5.000000e-01 : f32
    %265 = vector.broadcast %cst_102 : f32 to vector<8x128xf32>
    %266 = arith.addf %264, %265 : vector<8x128xf32>
    %267 = vector.extract_strided_slice %250 {offsets = [0, 256], sizes = [8, 128], strides = [1, 1]} : vector<8x512xf32> to vector<8x128xf32>
    %268 = math.tanh %267 : vector<8x128xf32>
    %269 = vector.extract_strided_slice %250 {offsets = [0, 384], sizes = [8, 128], strides = [1, 1]} : vector<8x512xf32> to vector<8x128xf32>
    %cst_103 = arith.constant 5.000000e-01 : f32
    %270 = vector.broadcast %cst_103 : f32 to vector<8x128xf32>
    %271 = arith.mulf %270, %269 : vector<8x128xf32>
    %272 = math.tanh %271 : vector<8x128xf32>
    %cst_104 = arith.constant 5.000000e-01 : f32
    %273 = vector.broadcast %cst_104 : f32 to vector<8x128xf32>
    %274 = arith.mulf %273, %272 : vector<8x128xf32>
    %cst_105 = arith.constant 5.000000e-01 : f32
    %275 = vector.broadcast %cst_105 : f32 to vector<8x128xf32>
    %276 = arith.addf %274, %275 : vector<8x128xf32>
    %277 = arith.mulf %266, %190 : vector<8x128xf32>
    %278 = arith.mulf %258, %268 : vector<8x128xf32>
    %279 = arith.addf %277, %278 : vector<8x128xf32>
    %280 = math.tanh %279 : vector<8x128xf32>
    %281 = arith.mulf %276, %280 : vector<8x128xf32>
    %282 = vector.broadcast %248 : vector<8x1xf32> to vector<8x128xf32>
    %283 = arith.mulf %281, %282 : vector<8x128xf32>
    %284 = vector.broadcast %248 : vector<8x1xf32> to vector<8x128xf32>
    %285 = arith.mulf %279, %284 : vector<8x128xf32>
    %286 = arith.index_cast %c2_i32 : i32 to index
    %c0_106 = arith.constant 0 : index
    %c0_107 = arith.constant 0 : index
    %287 = vector.load %arg7[%286, %c0_106, %c0_107] : memref<4x8x128xf32, #tpu.memory_space<vmem>>, vector<1x8x128xf32>
    %288 = vector.shape_cast %287 : vector<1x8x128xf32> to vector<8x128xf32>
    %289 = vector.shape_cast %239 : vector<8x128xf32> to vector<1x8x128xf32>
    tpu.vector_store %arg7[%286, %c0_106, %c0_107], %289 {strides = array<i32>} : memref<4x8x128xf32, #tpu.memory_space<vmem>>, vector<1x8x128xf32>,
    %290 = arith.index_cast %242 : i32 to index
    %c0_108 = arith.constant 0 : index
    %c0_109 = arith.constant 0 : index
    %291 = vector.load %arg8[%290, %c0_108, %c0_109] : memref<4x8x128xf32, #tpu.memory_space<vmem>>, vector<1x8x128xf32>
    %292 = vector.shape_cast %291 : vector<1x8x128xf32> to vector<8x128xf32>
    %293 = vector.shape_cast %283 : vector<8x128xf32> to vector<1x8x128xf32>
    tpu.vector_store %arg8[%290, %c0_108, %c0_109], %293 {strides = array<i32>} : memref<4x8x128xf32, #tpu.memory_space<vmem>>, vector<1x8x128xf32>,
    %c3_i32_110 = arith.constant 3 : i32
    %294 = arith.index_cast %c3_i32_110 : i32 to index
    %c0_111 = arith.constant 0 : index
    %c0_112 = arith.constant 0 : index
    %295 = vector.load %arg1[%294, %c0_111, %c0_112] : memref<4x8x512xf32, #tpu.memory_space<vmem>>, vector<1x8x512xf32>
    %296 = vector.shape_cast %295 : vector<1x8x512xf32> to vector<8x512xf32>
    %297 = arith.index_cast %c3_i32_110 : i32 to index
    %c0_113 = arith.constant 0 : index
    %c0_114 = arith.constant 0 : index
    %298 = vector.load %arg3[%297, %c0_113, %c0_114] : memref<4x8x1xf32, #tpu.memory_space<vmem>>, vector<1x8x1xf32>
    %299 = vector.shape_cast %298 : vector<1x8x1xf32> to vector<8x1xf32>
    %cst_115 = arith.constant dense<0.000000e+00> : vector<8x512xf32>
    %300 = tpu.matmul %239, %3, %cst_115 {dimension_numbers = #tpu.dot_dimension_numbers<[1], [0], [0], [1], [0, 0, 1, 1], [], []>} : vector<8x128xf32>, vector<128x512xf32>, vector<8x512xf32> -> vector<8x512xf32>
    %301 = arith.addf %296, %300 : vector<8x512xf32>
    %302 = vector.extract_strided_slice %301 {offsets = [0, 0], sizes = [8, 128], strides = [1, 1]} : vector<8x512xf32> to vector<8x128xf32>
    %cst_116 = arith.constant 5.000000e-01 : f32
    %303 = vector.broadcast %cst_116 : f32 to vector<8x128xf32>
    %304 = arith.mulf %303, %302 : vector<8x128xf32>
    %305 = math.tanh %304 : vector<8x128xf32>
    %cst_117 = arith.constant 5.000000e-01 : f32
    %306 = vector.broadcast %cst_117 : f32 to vector<8x128xf32>
    %307 = arith.mulf %306, %305 : vector<8x128xf32>
    %cst_118 = arith.constant 5.000000e-01 : f32
    %308 = vector.broadcast %cst_118 : f32 to vector<8x128xf32>
    %309 = arith.addf %307, %308 : vector<8x128xf32>
    %310 = vector.extract_strided_slice %301 {offsets = [0, 128], sizes = [8, 128], strides = [1, 1]} : vector<8x512xf32> to vector<8x128xf32>
    %cst_119 = arith.constant 5.000000e-01 : f32
    %311 = vector.broadcast %cst_119 : f32 to vector<8x128xf32>
    %312 = arith.mulf %311, %310 : vector<8x128xf32>
    %313 = math.tanh %312 : vector<8x128xf32>
    %cst_120 = arith.constant 5.000000e-01 : f32
    %314 = vector.broadcast %cst_120 : f32 to vector<8x128xf32>
    %315 = arith.mulf %314, %313 : vector<8x128xf32>
    %cst_121 = arith.constant 5.000000e-01 : f32
    %316 = vector.broadcast %cst_121 : f32 to vector<8x128xf32>
    %317 = arith.addf %315, %316 : vector<8x128xf32>
    %318 = vector.extract_strided_slice %301 {offsets = [0, 256], sizes = [8, 128], strides = [1, 1]} : vector<8x512xf32> to vector<8x128xf32>
    %319 = math.tanh %318 : vector<8x128xf32>
    %320 = vector.extract_strided_slice %301 {offsets = [0, 384], sizes = [8, 128], strides = [1, 1]} : vector<8x512xf32> to vector<8x128xf32>
    %cst_122 = arith.constant 5.000000e-01 : f32
    %321 = vector.broadcast %cst_122 : f32 to vector<8x128xf32>
    %322 = arith.mulf %321, %320 : vector<8x128xf32>
    %323 = math.tanh %322 : vector<8x128xf32>
    %cst_123 = arith.constant 5.000000e-01 : f32
    %324 = vector.broadcast %cst_123 : f32 to vector<8x128xf32>
    %325 = arith.mulf %324, %323 : vector<8x128xf32>
    %cst_124 = arith.constant 5.000000e-01 : f32
    %326 = vector.broadcast %cst_124 : f32 to vector<8x128xf32>
    %327 = arith.addf %325, %326 : vector<8x128xf32>
    %328 = arith.mulf %317, %241 : vector<8x128xf32>
    %329 = arith.mulf %309, %319 : vector<8x128xf32>
    %330 = arith.addf %328, %329 : vector<8x128xf32>
    %331 = math.tanh %330 : vector<8x128xf32>
    %332 = arith.mulf %327, %331 : vector<8x128xf32>
    %333 = vector.broadcast %299 : vector<8x1xf32> to vector<8x128xf32>
    %334 = arith.mulf %332, %333 : vector<8x128xf32>
    %335 = vector.broadcast %299 : vector<8x1xf32> to vector<8x128xf32>
    %336 = arith.mulf %330, %335 : vector<8x128xf32>
    %c3_i32_125 = arith.constant 3 : i32
    %337 = arith.subi %c3_i32_125, %c3_i32_110 : i32
    %338 = arith.index_cast %337 : i32 to index
    %c0_126 = arith.constant 0 : index
    %c0_127 = arith.constant 0 : index
    %339 = vector.load %arg2[%338, %c0_126, %c0_127] : memref<4x8x512xf32, #tpu.memory_space<vmem>>, vector<1x8x512xf32>
    %340 = vector.shape_cast %339 : vector<1x8x512xf32> to vector<8x512xf32>
    %341 = arith.index_cast %337 : i32 to index
    %c0_128 = arith.constant 0 : index
    %c0_129 = arith.constant 0 : index
    %342 = vector.load %arg4[%341, %c0_128, %c0_129] : memref<4x8x1xf32, #tpu.memory_space<vmem>>, vector<1x8x1xf32>
    %343 = vector.shape_cast %342 : vector<1x8x1xf32> to vector<8x1xf32>
    %cst_130 = arith.constant dense<0.000000e+00> : vector<8x512xf32>
    %344 = tpu.matmul %283, %4, %cst_130 {dimension_numbers = #tpu.dot_dimension_numbers<[1], [0], [0], [1], [0, 0, 1, 1], [], []>} : vector<8x128xf32>, vector<128x512xf32>, vector<8x512xf32> -> vector<8x512xf32>
    %345 = arith.addf %340, %344 : vector<8x512xf32>
    %346 = vector.extract_strided_slice %345 {offsets = [0, 0], sizes = [8, 128], strides = [1, 1]} : vector<8x512xf32> to vector<8x128xf32>
    %cst_131 = arith.constant 5.000000e-01 : f32
    %347 = vector.broadcast %cst_131 : f32 to vector<8x128xf32>
    %348 = arith.mulf %347, %346 : vector<8x128xf32>
    %349 = math.tanh %348 : vector<8x128xf32>
    %cst_132 = arith.constant 5.000000e-01 : f32
    %350 = vector.broadcast %cst_132 : f32 to vector<8x128xf32>
    %351 = arith.mulf %350, %349 : vector<8x128xf32>
    %cst_133 = arith.constant 5.000000e-01 : f32
    %352 = vector.broadcast %cst_133 : f32 to vector<8x128xf32>
    %353 = arith.addf %351, %352 : vector<8x128xf32>
    %354 = vector.extract_strided_slice %345 {offsets = [0, 128], sizes = [8, 128], strides = [1, 1]} : vector<8x512xf32> to vector<8x128xf32>
    %cst_134 = arith.constant 5.000000e-01 : f32
    %355 = vector.broadcast %cst_134 : f32 to vector<8x128xf32>
    %356 = arith.mulf %355, %354 : vector<8x128xf32>
    %357 = math.tanh %356 : vector<8x128xf32>
    %cst_135 = arith.constant 5.000000e-01 : f32
    %358 = vector.broadcast %cst_135 : f32 to vector<8x128xf32>
    %359 = arith.mulf %358, %357 : vector<8x128xf32>
    %cst_136 = arith.constant 5.000000e-01 : f32
    %360 = vector.broadcast %cst_136 : f32 to vector<8x128xf32>
    %361 = arith.addf %359, %360 : vector<8x128xf32>
    %362 = vector.extract_strided_slice %345 {offsets = [0, 256], sizes = [8, 128], strides = [1, 1]} : vector<8x512xf32> to vector<8x128xf32>
    %363 = math.tanh %362 : vector<8x128xf32>
    %364 = vector.extract_strided_slice %345 {offsets = [0, 384], sizes = [8, 128], strides = [1, 1]} : vector<8x512xf32> to vector<8x128xf32>
    %cst_137 = arith.constant 5.000000e-01 : f32
    %365 = vector.broadcast %cst_137 : f32 to vector<8x128xf32>
    %366 = arith.mulf %365, %364 : vector<8x128xf32>
    %367 = math.tanh %366 : vector<8x128xf32>
    %cst_138 = arith.constant 5.000000e-01 : f32
    %368 = vector.broadcast %cst_138 : f32 to vector<8x128xf32>
    %369 = arith.mulf %368, %367 : vector<8x128xf32>
    %cst_139 = arith.constant 5.000000e-01 : f32
    %370 = vector.broadcast %cst_139 : f32 to vector<8x128xf32>
    %371 = arith.addf %369, %370 : vector<8x128xf32>
    %372 = arith.mulf %361, %285 : vector<8x128xf32>
    %373 = arith.mulf %353, %363 : vector<8x128xf32>
    %374 = arith.addf %372, %373 : vector<8x128xf32>
    %375 = math.tanh %374 : vector<8x128xf32>
    %376 = arith.mulf %371, %375 : vector<8x128xf32>
    %377 = vector.broadcast %343 : vector<8x1xf32> to vector<8x128xf32>
    %378 = arith.mulf %376, %377 : vector<8x128xf32>
    %379 = vector.broadcast %343 : vector<8x1xf32> to vector<8x128xf32>
    %380 = arith.mulf %374, %379 : vector<8x128xf32>
    %381 = arith.index_cast %c3_i32_110 : i32 to index
    %c0_140 = arith.constant 0 : index
    %c0_141 = arith.constant 0 : index
    %382 = vector.load %arg7[%381, %c0_140, %c0_141] : memref<4x8x128xf32, #tpu.memory_space<vmem>>, vector<1x8x128xf32>
    %383 = vector.shape_cast %382 : vector<1x8x128xf32> to vector<8x128xf32>
    %384 = vector.shape_cast %334 : vector<8x128xf32> to vector<1x8x128xf32>
    tpu.vector_store %arg7[%381, %c0_140, %c0_141], %384 {strides = array<i32>} : memref<4x8x128xf32, #tpu.memory_space<vmem>>, vector<1x8x128xf32>,
    %385 = arith.index_cast %337 : i32 to index
    %c0_142 = arith.constant 0 : index
    %c0_143 = arith.constant 0 : index
    %386 = vector.load %arg8[%385, %c0_142, %c0_143] : memref<4x8x128xf32, #tpu.memory_space<vmem>>, vector<1x8x128xf32>
    %387 = vector.shape_cast %386 : vector<1x8x128xf32> to vector<8x128xf32>
    %388 = vector.shape_cast %378 : vector<8x128xf32> to vector<1x8x128xf32>
    tpu.vector_store %arg8[%385, %c0_142, %c0_143], %388 {strides = array<i32>} : memref<4x8x128xf32, #tpu.memory_space<vmem>>, vector<1x8x128xf32>,
    %c4_i32 = arith.constant 4 : i32
    %c0_144 = arith.constant 0 : index
    %c0_145 = arith.constant 0 : index
    %389 = vector.load %arg13[%c0_144, %c0_145] : memref<8x128xf32, #tpu.memory_space<vmem>>, vector<8x128xf32>
    tpu.vector_store %arg13[%c0_144, %c0_145], %334 {strides = array<i32>} : memref<8x128xf32, #tpu.memory_space<vmem>>, vector<8x128xf32>,
    %c0_146 = arith.constant 0 : index
    %c0_147 = arith.constant 0 : index
    %390 = vector.load %arg14[%c0_146, %c0_147] : memref<8x128xf32, #tpu.memory_space<vmem>>, vector<8x128xf32>
    tpu.vector_store %arg14[%c0_146, %c0_147], %336 {strides = array<i32>} : memref<8x128xf32, #tpu.memory_space<vmem>>, vector<8x128xf32>,
    %c0_148 = arith.constant 0 : index
    %c0_149 = arith.constant 0 : index
    %391 = vector.load %arg15[%c0_148, %c0_149] : memref<8x128xf32, #tpu.memory_space<vmem>>, vector<8x128xf32>
    tpu.vector_store %arg15[%c0_148, %c0_149], %378 {strides = array<i32>} : memref<8x128xf32, #tpu.memory_space<vmem>>, vector<8x128xf32>,
    %c0_150 = arith.constant 0 : index
    %c0_151 = arith.constant 0 : index
    %392 = vector.load %arg16[%c0_150, %c0_151] : memref<8x128xf32, #tpu.memory_space<vmem>>, vector<8x128xf32>
    tpu.vector_store %arg16[%c0_150, %c0_151], %380 {strides = array<i32>} : memref<8x128xf32, #tpu.memory_space<vmem>>, vector<8x128xf32>,
    %c1_i32_152 = arith.constant 1 : i32
    %393 = arith.cmpi eq, %arg0, %c1_i32_152 : i32
    %394 = arith.extui %393 : i1 to i32
    %c0_i32_153 = arith.constant 0 : i32
    %395 = arith.cmpi ne, %394, %c0_i32_153 : i32
    scf.if %395 {
      %c0_154 = arith.constant 0 : index
      %c0_155 = arith.constant 0 : index
      %396 = vector.load %arg9[%c0_154, %c0_155] : memref<8x128xf32, #tpu.memory_space<vmem>>, vector<8x128xf32>
      tpu.vector_store %arg9[%c0_154, %c0_155], %334 {strides = array<i32>} : memref<8x128xf32, #tpu.memory_space<vmem>>, vector<8x128xf32>,
      %c0_156 = arith.constant 0 : index
      %c0_157 = arith.constant 0 : index
      %397 = vector.load %arg10[%c0_156, %c0_157] : memref<8x128xf32, #tpu.memory_space<vmem>>, vector<8x128xf32>
      tpu.vector_store %arg10[%c0_156, %c0_157], %336 {strides = array<i32>} : memref<8x128xf32, #tpu.memory_space<vmem>>, vector<8x128xf32>,
      %c0_158 = arith.constant 0 : index
      %c0_159 = arith.constant 0 : index
      %398 = vector.load %arg11[%c0_158, %c0_159] : memref<8x128xf32, #tpu.memory_space<vmem>>, vector<8x128xf32>
      tpu.vector_store %arg11[%c0_158, %c0_159], %378 {strides = array<i32>} : memref<8x128xf32, #tpu.memory_space<vmem>>, vector<8x128xf32>,
      %c0_160 = arith.constant 0 : index
      %c0_161 = arith.constant 0 : index
      %399 = vector.load %arg12[%c0_160, %c0_161] : memref<8x128xf32, #tpu.memory_space<vmem>>, vector<8x128xf32>
      tpu.vector_store %arg12[%c0_160, %c0_161], %380 {strides = array<i32>} : memref<8x128xf32, #tpu.memory_space<vmem>>, vector<8x128xf32>,
    } else {
    }
    return
  }
  func.func @transform_0(%arg0: i32) -> (i32, i32, i32) {
    %c0_i32 = arith.constant 0 : i32
    %c0_i32_0 = arith.constant 0 : i32
    %c0_i32_1 = arith.constant 0 : i32
    return %arg0, %c0_i32, %c0_i32_0 : i32, i32, i32
  }
  func.func @transform_1(%arg0: i32) -> (i32, i32, i32) {
    %c1_i32 = arith.constant 1 : i32
    %0 = arith.subi %c1_i32, %arg0 : i32
    %c0_i32 = arith.constant 0 : i32
    %c1_i32_0 = arith.constant 1 : i32
    %c0_i32_1 = arith.constant 0 : i32
    return %0, %c0_i32, %c1_i32_0 : i32, i32, i32
  }
  func.func @transform_2(%arg0: i32) -> (i32, i32, i32) {
    %c0_i32 = arith.constant 0 : i32
    %c0_i32_0 = arith.constant 0 : i32
    %c0_i32_1 = arith.constant 0 : i32
    return %arg0, %c0_i32, %c0_i32_0 : i32, i32, i32
  }
  func.func @transform_3(%arg0: i32) -> (i32, i32, i32) {
    %c1_i32 = arith.constant 1 : i32
    %0 = arith.subi %c1_i32, %arg0 : i32
    %c0_i32 = arith.constant 0 : i32
    %c0_i32_0 = arith.constant 0 : i32
    %c0_i32_1 = arith.constant 0 : i32
    return %0, %c0_i32, %c0_i32_0 : i32, i32, i32
  }
  func.func @transform_4(%arg0: i32) -> (i32, i32) {
    %c0_i32 = arith.constant 0 : i32
    %c0_i32_0 = arith.constant 0 : i32
    %c0_i32_1 = arith.constant 0 : i32
    return %c0_i32, %c0_i32_0 : i32, i32
  }
  func.func @transform_5(%arg0: i32) -> (i32, i32) {
    %c0_i32 = arith.constant 0 : i32
    %c0_i32_0 = arith.constant 0 : i32
    %c0_i32_1 = arith.constant 0 : i32
    return %c0_i32, %c0_i32_0 : i32, i32
  }
  func.func @transform_6(%arg0: i32) -> (i32, i32, i32) {
    %c0_i32 = arith.constant 0 : i32
    %c0_i32_0 = arith.constant 0 : i32
    %c0_i32_1 = arith.constant 0 : i32
    return %arg0, %c0_i32, %c0_i32_0 : i32, i32, i32
  }
  func.func @transform_7(%arg0: i32) -> (i32, i32, i32) {
    %c1_i32 = arith.constant 1 : i32
    %0 = arith.subi %c1_i32, %arg0 : i32
    %c0_i32 = arith.constant 0 : i32
    %c0_i32_0 = arith.constant 0 : i32
    %c0_i32_1 = arith.constant 0 : i32
    return %0, %c0_i32, %c0_i32_0 : i32, i32, i32
  }
  func.func @transform_8(%arg0: i32) -> (i32, i32) {
    %c0_i32 = arith.constant 0 : i32
    %c0_i32_0 = arith.constant 0 : i32
    %c0_i32_1 = arith.constant 0 : i32
    return %c0_i32, %c0_i32_0 : i32, i32
  }
  func.func @transform_9(%arg0: i32) -> (i32, i32) {
    %c0_i32 = arith.constant 0 : i32
    %c0_i32_0 = arith.constant 0 : i32
    %c0_i32_1 = arith.constant 0 : i32
    return %c0_i32, %c0_i32_0 : i32, i32
  }
  func.func @transform_10(%arg0: i32) -> (i32, i32) {
    %c0_i32 = arith.constant 0 : i32
    %c0_i32_0 = arith.constant 0 : i32
    %c0_i32_1 = arith.constant 0 : i32
    return %c0_i32, %c0_i32_0 : i32, i32
  }
  func.func @transform_11(%arg0: i32) -> (i32, i32) {
    %c0_i32 = arith.constant 0 : i32
    %c0_i32_0 = arith.constant 0 : i32
    %c0_i32_1 = arith.constant 0 : i32
    return %c0_i32, %c0_i32_0 : i32, i32
  }
}

</mosaic_0001>

<llo_original>
// kernel: tpu_custom_call.1
$region0: #{tpu_custom_call.1}
  #allocation0 [shape = 'u32[]', space=smem, size = 0x4, offset = 0x4, fixed_abs, tag = 'smem constant byte address 0x4 - core index']
  #allocation1 [shape = 'u32[72,128]{1,0:T(1,128)}', space=vmem, size = 0x9000, scoped, tag = 'internal scratch']
  #allocation2 [shape = 'f32[8,128]{1,0:T(8,128)}', space=vmem, size = 0x1000, scoped, tag = 'scratch operand']
  #allocation3 [shape = 'f32[8,128]{1,0:T(8,128)}', space=vmem, size = 0x1000, scoped, tag = 'scratch operand']
  #allocation4 [shape = 'f32[8,128]{1,0:T(8,128)}', space=vmem, size = 0x1000, scoped, tag = 'scratch operand']
  #allocation5 [shape = 'f32[8,128]{1,0:T(8,128)}', space=vmem, size = 0x1000, scoped, tag = 'scratch operand']
  %s0 = inlined_call_operand.hbm [shape: f32[8,8,1024], index: 0, kind: input, shape index: {}]
  %s1 = inlined_call_operand.hbm [shape: f32[8,8,1024], index: 1, kind: input, shape index: {}]
  %s2 = inlined_call_operand.vmem [shape: f32[8,8,1], index: 2, kind: input, shape index: {}]
  %s3 = inlined_call_operand.vmem [shape: f32[8,8,1], index: 3, kind: input, shape index: {}]
  %s4 = inlined_call_operand.hbm [shape: f32[128,512], index: 4, kind: input, shape index: {}]
  %s5 = inlined_call_operand.hbm [shape: f32[128,512], index: 5, kind: input, shape index: {}]
  %s6 = inlined_call_operand.hbm [shape: f32[8,8,128], index: 6, kind: output, shape index: {0}]
  %s7 = inlined_call_operand.hbm [shape: f32[8,8,128], index: 7, kind: output, shape index: {1}]
  %s8 = inlined_call_operand.hbm [shape: f32[8,128], index: 8, kind: output, shape index: {2}]
  %s9 = inlined_call_operand.hbm [shape: f32[8,128], index: 9, kind: output, shape index: {3}]
  %s10 = inlined_call_operand.hbm [shape: f32[8,128], index: 10, kind: output, shape index: {4}]
  %s11 = inlined_call_operand.hbm [shape: f32[8,128], index: 11, kind: output, shape index: {5}]
  %12 = xla_tuple %s6, %s7, %s8, %s9, %s10, %s11
  %s13 = sld [smem:[#allocation0]]
  $region121: #{tpu_custom_call.1} parent=0
    _
  %s15 = ssub.s32 1, %s13
  %s16 = scalar_select 0, %s15, %s13
  $region1: #{tpu_custom_call.1} parent=0
    #allocation6 [shape = 'u8[131072]{0}', space=vmem, size = 0x20000, scoped, tag = 'input window, operand 0']
    #allocation7 [shape = 's32[2]{0}', space=sflag, size = 0x8, scoped, tag = 'scoped memory for tpu_custom_call.1']
    #allocation8 [shape = 's32[2]{0}', space=sflag, size = 0x8, scoped, tag = 'scoped memory for tpu_custom_call.1']
    #allocation9 [shape = 'u8[131072]{0}', space=vmem, size = 0x20000, scoped, tag = 'input window, operand 1']
    #allocation10 [shape = 's32[2]{0}', space=sflag, size = 0x8, scoped, tag = 'scoped memory for tpu_custom_call.1']
    #allocation11 [shape = 'u8[262144]{0}', space=vmem, size = 0x40000, scoped, tag = 'input window, operand 4, single buffered']
    #allocation12 [shape = 'u8[262144]{0}', space=vmem, size = 0x40000, scoped, tag = 'input window, operand 5, single buffered']
    #allocation13 [shape = 's32[1]{0}', space=sflag, size = 0x4, scoped, tag = 'scoped memory for tpu_custom_call.1']
    #allocation14 [shape = 'u8[32768]{0}', space=vmem, size = 0x8000, scoped, tag = 'output window, operand 0']
    #allocation15 [shape = 'u8[32768]{0}', space=vmem, size = 0x8000, scoped, tag = 'output window, operand 1']
    #allocation16 [shape = 's32[2]{0}', space=sflag, size = 0x8, scoped, tag = 'scoped memory for tpu_custom_call.1']
    #allocation17 [shape = 'u8[4096]{0}', space=vmem, size = 0x1000, scoped, tag = 'output window, operand 2, single buffered']
    #allocation18 [shape = 'u8[4096]{0}', space=vmem, size = 0x1000, scoped, tag = 'output window, operand 3, single buffered']
    #allocation19 [shape = 's32[1]{0}', space=sflag, size = 0x4, scoped, tag = 'scoped memory for tpu_custom_call.1']
    #allocation20 [shape = 'u8[4096]{0}', space=vmem, size = 0x1000, scoped, tag = 'output window, operand 4, single buffered']
    #allocation21 [shape = 'u8[4096]{0}', space=vmem, size = 0x1000, scoped, tag = 'output window, operand 5, single buffered']
    #allocation22 [shape = 's32[1]{0}', space=sflag, size = 0x4, scoped, tag = 'scoped memory for tpu_custom_call.1']
    %17 = vsyncpa [#allocation7], 0
    %s18 = scalar_lea.sflag [#allocation7], 1
    %19 = vsyncpa %s18, 0
    %20 = vsyncpa [#allocation10], 0
    %s21 = scalar_lea.sflag [#allocation10], 1
    %22 = vsyncpa %s21, 0
    %23 = vsyncpa [#allocation13], 0
    %24 = vsyncpa [#allocation8], 0
    %s25 = scalar_lea.sflag [#allocation8], 1
    %26 = vsyncpa %s25, 0
    %27 = vsyncpa [#allocation16], 0
    %s28 = scalar_lea.sflag [#allocation16], 1
    %29 = vsyncpa %s28, 0
    %30 = vsyncpa [#allocation19], 0
    %31 = vsyncpa [#allocation22], 0
    loop: start=0, step=1, limit=4
    $region2: #{tpu_custom_call.1} parent=1 // loop_pre_header
      _
    $region3: #{tpu_custom_call.1} parent=1 // loop_header
      %s33 = sphi 0, %s37
      %p34 = scmp.ge.s32.totalorder %s33, 4
      %s43 = sphi 0, %s45
      %s46 = sphi 0, %s43
      %s47 = sphi 0, %s46
      %s63 = sphi 0, %s47
      %s71 = sphi 0, %s73
      %s74 = sphi 0, %s71
      %s75 = sphi 0, %s74
      %s91 = sphi 0, %s75
      %s97 = sphi 0, %s99
      %s100 = sphi 0, %s97
      %s101 = sphi 0, %s100
      %s117 = sphi 0, %s101
      %s125 = sphi 0, %s127
      %s128 = sphi 0, %s125
      %s129 = sphi 0, %s128
      %s145 = sphi 0, %s129
      %s149 = sphi 0, %s149
      %s151 = sphi 0, %s149
      %s152 = sphi 0, %s151
      %s166 = sphi 0, %s152
      %s170 = sphi 0, %s170
      %s172 = sphi 0, %s170
      %s173 = sphi 0, %s172
      %s187 = sphi 0, %s173
      %s193 = sphi 0, %s195
      %s196 = sphi 0, %s193
      %s197 = sphi 0, %s196
      %s213 = sphi 0, %s197
      %s221 = sphi 0, %s223
      %s224 = sphi 0, %s221
      %s225 = sphi 0, %s224
      %s241 = sphi 0, %s225
      %s245 = sphi 0, %s245
      %s247 = sphi 0, %s245
      %s248 = sphi 0, %s247
      %s262 = sphi 0, %s248
      %s266 = sphi 0, %s266
      %s268 = sphi 0, %s266
      %s269 = sphi 0, %s268
      %s283 = sphi 0, %s269
      %s287 = sphi 0, %s287
      %s289 = sphi 0, %s287
      %s290 = sphi 0, %s289
      %s304 = sphi 0, %s290
      %s308 = sphi 0, %s308
      %s310 = sphi 0, %s308
      %s311 = sphi 0, %s310
      %s325 = sphi 0, %s311
    $region4: #{tpu_custom_call.1} parent=1 // loop_header_branch
      %36 = sbr.rel (%p34) target = $region8
    $region5: #{tpu_custom_call.1} parent=1 // loop_body
      %s38 = ssub.s32 %s33, 1
      %s39 = ssub.s32 %s33, 2
      %s40 = sadd.s32 %s33, 1
      %s41 = ssub.s32 %s33, %s40
      %p42 = scmp.eq.s32.totalorder %s41, 0
      %s44 = sadd.s32 %s43, 1
      %s45 = scalar_select %p42, %s43, %s44
      %p48 = pneg %p42
      %p49 = scmp.eq.s32.totalorder %s33, 1
      %p50 = por %p48, %p49
      %p51 = scmp.ne.s32.totalorder %s43, %s46
      %p52 = scmp.eq.s32.totalorder %s33, 0
      %p53 = por %p51, %p52
      %p54 = scmp.ne.s32.totalorder %s43, %s46
      %p55 = scmp.eq.s32.totalorder %s38, 1
      %p56 = por %p54, %p55
      %p57 = scmp.ne.s32.totalorder %s46, %s47
      %p58 = scmp.eq.s32.totalorder %s38, 0
      %p59 = por %p57, %p58
      %p60 = scmp.ne.s32.totalorder %s46, %s47
      %p61 = scmp.eq.s32.totalorder %s39, 1
      %p62 = por %p60, %p61
      %p64 = scmp.ne.s32.totalorder %s47, %s63
      %p65 = scmp.eq.s32.totalorder %s39, 0
      %p66 = por %p64, %p65
      %s67 = ssub.s32 1, %s33
      %s68 = ssub.s32 1, %s40
      %s69 = ssub.s32 %s67, %s68
      %p70 = scmp.eq.s32.totalorder %s69, 0
      %s72 = sadd.s32 %s71, 1
      %s73 = scalar_select %p70, %s71, %s72
      %p76 = pneg %p70
      %p77 = scmp.eq.s32.totalorder %s33, 1
      %p78 = por %p76, %p77
      %p79 = scmp.ne.s32.totalorder %s71, %s74
      %p80 = scmp.eq.s32.totalorder %s33, 0
      %p81 = por %p79, %p80
      %p82 = scmp.ne.s32.totalorder %s71, %s74
      %p83 = scmp.eq.s32.totalorder %s38, 1
      %p84 = por %p82, %p83
      %p85 = scmp.ne.s32.totalorder %s74, %s75
      %p86 = scmp.eq.s32.totalorder %s38, 0
      %p87 = por %p85, %p86
      %p88 = scmp.ne.s32.totalorder %s74, %s75
      %p89 = scmp.eq.s32.totalorder %s39, 1
      %p90 = por %p88, %p89
      %p92 = scmp.ne.s32.totalorder %s75, %s91
      %p93 = scmp.eq.s32.totalorder %s39, 0
      %p94 = por %p92, %p93
      %s95 = ssub.s32 %s33, %s40
      %p96 = scmp.eq.s32.totalorder %s95, 0
      %s98 = sadd.s32 %s97, 1
      %s99 = scalar_select %p96, %s97, %s98
      %p102 = pneg %p96
      %p103 = scmp.eq.s32.totalorder %s33, 1
      %p104 = por %p102, %p103
      %p105 = scmp.ne.s32.totalorder %s97, %s100
      %p106 = scmp.eq.s32.totalorder %s33, 0
      %p107 = por %p105, %p106
      %p108 = scmp.ne.s32.totalorder %s97, %s100
      %p109 = scmp.eq.s32.totalorder %s38, 1
      %p110 = por %p108, %p109
      %p111 = scmp.ne.s32.totalorder %s100, %s101
      %p112 = scmp.eq.s32.totalorder %s38, 0
      %p113 = por %p111, %p112
      %p114 = scmp.ne.s32.totalorder %s100, %s101
      %p115 = scmp.eq.s32.totalorder %s39, 1
      %p116 = por %p114, %p115
      %p118 = scmp.ne.s32.totalorder %s101, %s117
      %p119 = scmp.eq.s32.totalorder %s39, 0
      %p120 = por %p118, %p119
      %s121 = ssub.s32 1, %s33
      %s122 = ssub.s32 1, %s40
      %s123 = ssub.s32 %s121, %s122
      %p124 = scmp.eq.s32.totalorder %s123, 0
      %s126 = sadd.s32 %s125, 1
      %s127 = scalar_select %p124, %s125, %s126
      %p130 = pneg %p124
      %p131 = scmp.eq.s32.totalorder %s33, 1
      %p132 = por %p130, %p131
      %p133 = scmp.ne.s32.totalorder %s125, %s128
      %p134 = scmp.eq.s32.totalorder %s33, 0
      %p135 = por %p133, %p134
      %p136 = scmp.ne.s32.totalorder %s125, %s128
      %p137 = scmp.eq.s32.totalorder %s38, 1
      %p138 = por %p136, %p137
      %p139 = scmp.ne.s32.totalorder %s128, %s129
      %p140 = scmp.eq.s32.totalorder %s38, 0
      %p141 = por %p139, %p140
      %p142 = scmp.ne.s32.totalorder %s128, %s129
      %p143 = scmp.eq.s32.totalorder %s39, 1
      %p144 = por %p142, %p143
      %p146 = scmp.ne.s32.totalorder %s129, %s145
      %p147 = scmp.eq.s32.totalorder %s39, 0
      %p148 = por %p146, %p147
      %s150 = sadd.s32 %s149, 1
      %p153 = scmp.eq.s32.totalorder %s33, 1
      %p154 = scmp.ne.s32.totalorder %s149, %s151
      %p155 = scmp.eq.s32.totalorder %s33, 0
      %p156 = por %p154, %p155
      %p157 = scmp.ne.s32.totalorder %s149, %s151
      %p158 = scmp.eq.s32.totalorder %s38, 1
      %p159 = por %p157, %p158
      %p160 = scmp.ne.s32.totalorder %s151, %s152
      %p161 = scmp.eq.s32.totalorder %s38, 0
      %p162 = por %p160, %p161
      %p163 = scmp.ne.s32.totalorder %s151, %s152
      %p164 = scmp.eq.s32.totalorder %s39, 1
      %p165 = por %p163, %p164
      %p167 = scmp.ne.s32.totalorder %s152, %s166
      %p168 = scmp.eq.s32.totalorder %s39, 0
      %p169 = por %p167, %p168
      %s171 = sadd.s32 %s170, 1
      %p174 = scmp.eq.s32.totalorder %s33, 1
      %p175 = scmp.ne.s32.totalorder %s170, %s172
      %p176 = scmp.eq.s32.totalorder %s33, 0
      %p177 = por %p175, %p176
      %p178 = scmp.ne.s32.totalorder %s170, %s172
      %p179 = scmp.eq.s32.totalorder %s38, 1
      %p180 = por %p178, %p179
      %p181 = scmp.ne.s32.totalorder %s172, %s173
      %p182 = scmp.eq.s32.totalorder %s38, 0
      %p183 = por %p181, %p182
      %p184 = scmp.ne.s32.totalorder %s172, %s173
      %p185 = scmp.eq.s32.totalorder %s39, 1
      %p186 = por %p184, %p185
      %p188 = scmp.ne.s32.totalorder %s173, %s187
      %p189 = scmp.eq.s32.totalorder %s39, 0
      %p190 = por %p188, %p189
      %s191 = ssub.s32 %s33, %s40
      %p192 = scmp.eq.s32.totalorder %s191, 0
      %s194 = sadd.s32 %s193, 1
      %s195 = scalar_select %p192, %s193, %s194
      %p198 = pneg %p192
      %p199 = scmp.eq.s32.totalorder %s33, 1
      %p200 = por %p198, %p199
      %p201 = scmp.ne.s32.totalorder %s193, %s196
      %p202 = scmp.eq.s32.totalorder %s33, 0
      %p203 = por %p201, %p202
      %p204 = scmp.ne.s32.totalorder %s193, %s196
      %p205 = scmp.eq.s32.totalorder %s38, 1
      %p206 = por %p204, %p205
      %p207 = scmp.ne.s32.totalorder %s196, %s197
      %p208 = scmp.eq.s32.totalorder %s38, 0
      %p209 = por %p207, %p208
      %p210 = scmp.ne.s32.totalorder %s196, %s197
      %p211 = scmp.eq.s32.totalorder %s39, 1
      %p212 = por %p210, %p211
      %p214 = scmp.ne.s32.totalorder %s197, %s213
      %p215 = scmp.eq.s32.totalorder %s39, 0
      %p216 = por %p214, %p215
      %s217 = ssub.s32 1, %s33
      %s218 = ssub.s32 1, %s40
      %s219 = ssub.s32 %s217, %s218
      %p220 = scmp.eq.s32.totalorder %s219, 0
      %s222 = sadd.s32 %s221, 1
      %s223 = scalar_select %p220, %s221, %s222
      %p226 = pneg %p220
      %p227 = scmp.eq.s32.totalorder %s33, 1
      %p228 = por %p226, %p227
      %p229 = scmp.ne.s32.totalorder %s221, %s224
      %p230 = scmp.eq.s32.totalorder %s33, 0
      %p231 = por %p229, %p230
      %p232 = scmp.ne.s32.totalorder %s221, %s224
      %p233 = scmp.eq.s32.totalorder %s38, 1
      %p234 = por %p232, %p233
      %p235 = scmp.ne.s32.totalorder %s224, %s225
      %p236 = scmp.eq.s32.totalorder %s38, 0
      %p237 = por %p235, %p236
      %p238 = scmp.ne.s32.totalorder %s224, %s225
      %p239 = scmp.eq.s32.totalorder %s39, 1
      %p240 = por %p238, %p239
      %p242 = scmp.ne.s32.totalorder %s225, %s241
      %p243 = scmp.eq.s32.totalorder %s39, 0
      %p244 = por %p242, %p243
      %s246 = sadd.s32 %s245, 1
      %p249 = scmp.eq.s32.totalorder %s33, 1
      %p250 = scmp.ne.s32.totalorder %s245, %s247
      %p251 = scmp.eq.s32.totalorder %s33, 0
      %p252 = por %p250, %p251
      %p253 = scmp.ne.s32.totalorder %s245, %s247
      %p254 = scmp.eq.s32.totalorder %s38, 1
      %p255 = por %p253, %p254
      %p256 = scmp.ne.s32.totalorder %s247, %s248
      %p257 = scmp.eq.s32.totalorder %s38, 0
      %p258 = por %p256, %p257
      %p259 = scmp.ne.s32.totalorder %s247, %s248
      %p260 = scmp.eq.s32.totalorder %s39, 1
      %p261 = por %p259, %p260
      %p263 = scmp.ne.s32.totalorder %s248, %s262
      %p264 = scmp.eq.s32.totalorder %s39, 0
      %p265 = por %p263, %p264
      %s267 = sadd.s32 %s266, 1
      %p270 = scmp.eq.s32.totalorder %s33, 1
      %p271 = scmp.ne.s32.totalorder %s266, %s268
      %p272 = scmp.eq.s32.totalorder %s33, 0
      %p273 = por %p271, %p272
      %p274 = scmp.ne.s32.totalorder %s266, %s268
      %p275 = scmp.eq.s32.totalorder %s38, 1
      %p276 = por %p274, %p275
      %p277 = scmp.ne.s32.totalorder %s268, %s269
      %p278 = scmp.eq.s32.totalorder %s38, 0
      %p279 = por %p277, %p278
      %p280 = scmp.ne.s32.totalorder %s268, %s269
      %p281 = scmp.eq.s32.totalorder %s39, 1
      %p282 = por %p280, %p281
      %p284 = scmp.ne.s32.totalorder %s269, %s283
      %p285 = scmp.eq.s32.totalorder %s39, 0
      %p286 = por %p284, %p285
      %s288 = sadd.s32 %s287, 1
      %p291 = scmp.eq.s32.totalorder %s33, 1
      %p292 = scmp.ne.s32.totalorder %s287, %s289
      %p293 = scmp.eq.s32.totalorder %s33, 0
      %p294 = por %p292, %p293
      %p295 = scmp.ne.s32.totalorder %s287, %s289
      %p296 = scmp.eq.s32.totalorder %s38, 1
      %p297 = por %p295, %p296
      %p298 = scmp.ne.s32.totalorder %s289, %s290
      %p299 = scmp.eq.s32.totalorder %s38, 0
      %p300 = por %p298, %p299
      %p301 = scmp.ne.s32.totalorder %s289, %s290
      %p302 = scmp.eq.s32.totalorder %s39, 1
      %p303 = por %p301, %p302
      %p305 = scmp.ne.s32.totalorder %s290, %s304
      %p306 = scmp.eq.s32.totalorder %s39, 0
      %p307 = por %p305, %p306
      %s309 = sadd.s32 %s308, 1
      %p312 = scmp.eq.s32.totalorder %s33, 1
      %p313 = scmp.ne.s32.totalorder %s308, %s310
      %p314 = scmp.eq.s32.totalorder %s33, 0
      %p315 = por %p313, %p314
      %p316 = scmp.ne.s32.totalorder %s308, %s310
      %p317 = scmp.eq.s32.totalorder %s38, 1
      %p318 = por %p316, %p317
      %p319 = scmp.ne.s32.totalorder %s310, %s311
      %p320 = scmp.eq.s32.totalorder %s38, 0
      %p321 = por %p319, %p320
      %p322 = scmp.ne.s32.totalorder %s310, %s311
      %p323 = scmp.eq.s32.totalorder %s39, 1
      %p324 = por %p322, %p323
      %p326 = scmp.ne.s32.totalorder %s311, %s325
      %p327 = scmp.eq.s32.totalorder %s39, 0
      %p328 = por %p326, %p327
      %p329 = scmp.le.s32.totalorder 1, %s33
      %p330 = scmp.lt.s32.totalorder %s33, 3
      %p331 = pnand %p329, %p330
      %p332 = pneg %p331
      // Predicated region
      $region9: #{tpu_custom_call.1} parent=5 // pred_check
        _
      $region10: #{tpu_custom_call.1} parent=5 // pred_check_branch
        %334 = sbr.rel (%p331) target = $region12
      $region11: #{tpu_custom_call.1} parent=5 // pred_region
        %s335 = ssub.s32 %s33, 1
        // Predicated region
        $region13: #{tpu_custom_call.1} parent=11 // pred_check
          %p336 = pneg %p162
        $region14: #{tpu_custom_call.1} parent=11 // pred_check_branch
          %338 = sbr.rel (%p336) target = $region16
        $region15: #{tpu_custom_call.1} parent=11 // pred_region
          %340 = vsyncadd [#allocation10], 0
          %s341 = sshll.u32 %s4, 4
          %s342 = int_to_ptr.hbm [resolvable:$true] %s341
          %s343 = sshll.u32 [#allocation11], 4
          %s344 = int_to_ptr.vmem [resolvable:$true] %s343
          %349 = dma.hbm_to_vmem [thread:$0]  %s342, 8192, %s344, [#allocation10], 512, 512, 32
        $region16: #{tpu_custom_call.1} parent=11 // pred_fallthru
          _
        // Predicated region
        $region17: #{tpu_custom_call.1} parent=11 // pred_check
          %p350 = pneg %p183
        $region18: #{tpu_custom_call.1} parent=11 // pred_check_branch
          %352 = sbr.rel (%p350) target = $region20
        $region19: #{tpu_custom_call.1} parent=11 // pred_region
          %354 = vsyncadd [#allocation13], 0
          %s355 = sshll.u32 %s5, 4
          %s356 = int_to_ptr.hbm [resolvable:$true] %s355
          %s357 = sshll.u32 [#allocation12], 4
          %s358 = int_to_ptr.vmem [resolvable:$true] %s357
          %363 = dma.hbm_to_vmem [thread:$0]  %s356, 8192, %s358, [#allocation13], 512, 512, 32
        $region20: #{tpu_custom_call.1} parent=11 // pred_fallthru
          _
      $region12: #{tpu_custom_call.1} parent=5 // pred_fallthru
        _
      %p364 = scmp.lt.s32.totalorder %s33, 2
      // Predicated region
      $region21: #{tpu_custom_call.1} parent=5 // pred_check
        %p365 = pneg %p364
      $region22: #{tpu_custom_call.1} parent=5 // pred_check_branch
        %367 = sbr.rel (%p365) target = $region24
      $region23: #{tpu_custom_call.1} parent=5 // pred_region
        // Predicated region
        $region25: #{tpu_custom_call.1} parent=23 // pred_check
          %p368 = pneg %p53
        $region26: #{tpu_custom_call.1} parent=23 // pred_check_branch
          %370 = sbr.rel (%p368) target = $region28
        $region27: #{tpu_custom_call.1} parent=23 // pred_region
          %s371 = sand.u32 %s43, 1
          %s372 = scalar_lea.sflag [#allocation7], %s371
          %s373 = sand.u32 %s43, 1
          %s374 = smul.addr %s373, 128
          %s375 = scalar_lea.vmem [#allocation6], %s374
          %s376 = smul.u32 4, %s33
          %378 = vsyncadd %s372, 0
          %s379 = smul.addr %s376, 8
          %s380 = smul.addr %s379, 8
          %s381 = scalar_lea.hbm %s0, %s380
          %s382 = sshll.u32 %s381, 4
          %s383 = int_to_ptr.hbm [resolvable:$true] %s382
          %s384 = sshll.u32 %s375, 4
          %s385 = int_to_ptr.vmem [resolvable:$true] %s384
          %390 = dma.hbm_to_vmem [thread:$0]  %s383, 2048, %s385, %s372, 1024, 512, 32
        $region28: #{tpu_custom_call.1} parent=23 // pred_fallthru
          _
        // Predicated region
        $region29: #{tpu_custom_call.1} parent=23 // pred_check
          %p391 = pneg %p81
        $region30: #{tpu_custom_call.1} parent=23 // pred_check_branch
          %393 = sbr.rel (%p391) target = $region32
        $region31: #{tpu_custom_call.1} parent=23 // pred_region
          %s394 = sand.u32 %s33, 1
          %s395 = scalar_lea.sflag [#allocation10], %s394
          %s396 = sand.u32 %s71, 1
          %s397 = smul.addr %s396, 128
          %s398 = scalar_lea.vmem [#allocation9], %s397
          %s399 = ssub.s32 1, %s33
          %s400 = smul.u32 4, %s399
          %402 = vsyncadd %s395, 0
          %s403 = smul.addr %s400, 8
          %s404 = sadd.s32 4, %s403
          %s405 = smul.addr %s404, 8
          %s406 = scalar_lea.hbm %s1, %s405
          %s407 = sshll.u32 %s406, 4
          %s408 = int_to_ptr.hbm [resolvable:$true] %s407
          %s409 = sshll.u32 %s398, 4
          %s410 = int_to_ptr.vmem [resolvable:$true] %s409
          %415 = dma.hbm_to_vmem [thread:$0]  %s408, 2048, %s410, %s395, 1024, 512, 32
        $region32: #{tpu_custom_call.1} parent=23 // pred_fallthru
          _
        // Predicated region
        $region33: #{tpu_custom_call.1} parent=23 // pred_check
          %p416 = pneg %p107
        $region34: #{tpu_custom_call.1} parent=23 // pred_check_branch
          %418 = sbr.rel (%p416) target = $region36
        $region35: #{tpu_custom_call.1} parent=23 // pred_region
          %s419 = smul.u32 4, %s33
          %p420 = scmp.lt.s32.totalorder %s419, 7
          %s421 = scalar_select %p420, %s419, 7
          %s422 = smul.addr %s421, 8
          %s423 = scalar_lea.vmem %s2, %s422
          %s424 = smul.u32 4, %s33
        $region36: #{tpu_custom_call.1} parent=23 // pred_fallthru
          _
        // Predicated region
        $region37: #{tpu_custom_call.1} parent=23 // pred_check
          %p425 = pneg %p135
        $region38: #{tpu_custom_call.1} parent=23 // pred_check_branch
          %427 = sbr.rel (%p425) target = $region40
        $region39: #{tpu_custom_call.1} parent=23 // pred_region
          %s428 = ssub.s32 1, %s33
          %s429 = smul.u32 4, %s428
          %p430 = scmp.lt.s32.totalorder %s429, 7
          %s431 = scalar_select %p430, %s429, 7
          %s432 = smul.addr %s431, 8
          %s433 = scalar_lea.vmem %s3, %s432
          %s434 = ssub.s32 1, %s33
          %s435 = smul.u32 4, %s434
        $region40: #{tpu_custom_call.1} parent=23 // pred_fallthru
          _
      $region24: #{tpu_custom_call.1} parent=5 // pred_fallthru
        _
      %p436 = scmp.le.s32.totalorder 1, %s33
      %p437 = scmp.lt.s32.totalorder %s33, 3
      %p438 = pnand %p436, %p437
      %p439 = pneg %p438
      // Predicated region
      $region41: #{tpu_custom_call.1} parent=5 // pred_check
        _
      $region42: #{tpu_custom_call.1} parent=5 // pred_check_branch
        %441 = sbr.rel (%p438) target = $region44
      $region43: #{tpu_custom_call.1} parent=5 // pred_region
        %s442 = ssub.s32 %s33, 1
        %s443 = sand.u32 %s46, 1
        %s444 = scalar_lea.sflag [#allocation7], %s443
        %s445 = sand.u32 %s46, 1
        %s446 = smul.addr %s445, 128
        %s447 = scalar_lea.vmem [#allocation6], %s446
        // Predicated region
        $region45: #{tpu_custom_call.1} parent=43 // pred_check
          %p448 = pneg %p59
        $region46: #{tpu_custom_call.1} parent=43 // pred_check_branch
          %450 = sbr.rel (%p448) target = $region48
        $region47: #{tpu_custom_call.1} parent=43 // pred_region
          %452 = dma.done %s444, 2048
        $region48: #{tpu_custom_call.1} parent=43 // pred_fallthru
          _
        %s453 = sand.u32 %s38, 1
        %s454 = scalar_lea.sflag [#allocation10], %s453
        %s455 = sand.u32 %s74, 1
        %s456 = smul.addr %s455, 128
        %s457 = scalar_lea.vmem [#allocation9], %s456
        // Predicated region
        $region49: #{tpu_custom_call.1} parent=43 // pred_check
          %p458 = pneg %p87
        $region50: #{tpu_custom_call.1} parent=43 // pred_check_branch
          %460 = sbr.rel (%p458) target = $region52
        $region51: #{tpu_custom_call.1} parent=43 // pred_region
          %462 = dma.done %s454, 2048
        $region52: #{tpu_custom_call.1} parent=43 // pred_fallthru
          _
        // Predicated region
        $region53: #{tpu_custom_call.1} parent=43 // pred_check
          %p463 = pneg %p162
        $region54: #{tpu_custom_call.1} parent=43 // pred_check_branch
          %465 = sbr.rel (%p463) target = $region56
        $region55: #{tpu_custom_call.1} parent=43 // pred_region
          %467 = dma.done [#allocation10], 8192
        $region56: #{tpu_custom_call.1} parent=43 // pred_fallthru
          _
        // Predicated region
        $region57: #{tpu_custom_call.1} parent=43 // pred_check
          %p468 = pneg %p183
        $region58: #{tpu_custom_call.1} parent=43 // pred_check_branch
          %470 = sbr.rel (%p468) target = $region60
        $region59: #{tpu_custom_call.1} parent=43 // pred_region
          %472 = dma.done [#allocation13], 8192
        $region60: #{tpu_custom_call.1} parent=43 // pred_fallthru
          _
        %s473 = sand.u32 %s46, 1
        %s474 = scalar_lea.sflag [#allocation7], %s473
        %s475 = sand.u32 %s46, 1
        %s476 = smul.addr %s475, 128
        %s477 = scalar_lea.vmem [#allocation6], %s476
        %p478 = pneg %p59
        %p479 = pneg %p56
        %s480 = sand.u32 %s38, 1
        %s481 = scalar_lea.sflag [#allocation10], %s480
        %s482 = sand.u32 %s74, 1
        %s483 = smul.addr %s482, 128
        %s484 = scalar_lea.vmem [#allocation9], %s483
        %p485 = pneg %p87
        %p486 = pneg %p84
        %s487 = smul.u32 4, %s38
        %p488 = scmp.lt.s32.totalorder %s487, 7
        %s489 = scalar_select %p488, %s487, 7
        %s490 = smul.addr %s489, 8
        %s491 = scalar_lea.vmem %s2, %s490
        %p492 = pneg %p113
        %p493 = pneg %p110
        %s494 = ssub.s32 1, %s38
        %s495 = smul.u32 4, %s494
        %p496 = scmp.lt.s32.totalorder %s495, 7
        %s497 = scalar_select %p496, %s495, 7
        %s498 = smul.addr %s497, 8
        %s499 = scalar_lea.vmem %s3, %s498
        %p500 = pneg %p141
        %p501 = pneg %p138
        %p502 = pneg %p162
        %p503 = pneg %p159
        %p504 = pneg %p183
        %p505 = pneg %p180
        %p506 = pneg %p209
        %p507 = pneg %p206
        %s508 = sand.u32 %s196, 1
        %s509 = scalar_lea.sflag [#allocation8], %s508
        %s510 = sand.u32 %s196, 1
        %s511 = smul.addr %s510, 32
        %s512 = scalar_lea.vmem [#allocation14], %s511
        %p513 = pneg %p237
        %p514 = pneg %p234
        %s515 = sand.u32 %s38, 1
        %s516 = scalar_lea.sflag [#allocation16], %s515
        %s517 = sand.u32 %s224, 1
        %s518 = smul.addr %s517, 32
        %s519 = scalar_lea.vmem [#allocation15], %s518
        %p520 = pneg %p258
        %p521 = pneg %p255
        %p522 = pneg %p279
        %p523 = pneg %p276
        %p524 = pneg %p300
        %p525 = pneg %p297
        %p526 = pneg %p321
        %p527 = pneg %p318
        %s528 = smul.u32 4, %s38
        %s529 = ssub.s32 1, %s38
        %s530 = smul.u32 4, %s529
        %s531 = smul.u32 4, %s38
        %p532 = scmp.lt.s32.totalorder %s531, 7
        %s533 = scalar_select %p532, %s531, 7
        %s534 = smul.addr %s533, 8
        %s535 = scalar_lea.vmem %s2, %s534
        %s536 = smul.u32 4, %s38
        %s537 = ssub.s32 1, %s38
        %s538 = smul.u32 4, %s537
        %p539 = scmp.lt.s32.totalorder %s538, 7
        %s540 = scalar_select %p539, %s538, 7
        %s541 = smul.addr %s540, 8
        %s542 = scalar_lea.vmem %s3, %s541
        %s543 = ssub.s32 1, %s38
        %s544 = smul.u32 4, %s543
        %s545 = smul.u32 4, %s38
        %s546 = ssub.s32 1, %s38
        %s547 = smul.u32 4, %s546
        %p548 = scmp.eq.s32.totalorder %s38, 0
        // Predicated region
        $region61: #{tpu_custom_call.1} parent=43 // pred_check
          %p549 = pneg %p548
        $region62: #{tpu_custom_call.1} parent=43 // pred_check_branch
          %551 = sbr.rel (%p549) target = $region64
        $region63: #{tpu_custom_call.1} parent=43 // pred_region
          %552 = vst [vmem:[#allocation2] sm:$0xff] 0.0
          %553 = vst [vmem:[#allocation3] sm:$0xff] 0.0
          %554 = vst [vmem:[#allocation4] sm:$0xff] 0.0
          %555 = vst [vmem:[#allocation5] sm:$0xff] 0.0
        $region64: #{tpu_custom_call.1} parent=43 // pred_fallthru
          _
        %v556 = vld [vmem:[#allocation11] sm:$0xff]
        %v557 = vld [vmem:[#allocation11 + $0x8] sm:$0xff]
        %v558 = vld [vmem:[#allocation11 + $0x10] sm:$0xff]
        %v559 = vld [vmem:[#allocation11 + $0x18] sm:$0xff]
        %v560 = vld [vmem:[#allocation11 + $0x20] sm:$0xff]
        %v561 = vld [vmem:[#allocation11 + $0x28] sm:$0xff]
        %v562 = vld [vmem:[#allocation11 + $0x30] sm:$0xff]
        %v563 = vld [vmem:[#allocation11 + $0x38] sm:$0xff]
        %v564 = vld [vmem:[#allocation11 + $0x40] sm:$0xff]
        %v565 = vld [vmem:[#allocation11 + $0x48] sm:$0xff]
        %v566 = vld [vmem:[#allocation11 + $0x50] sm:$0xff]
        %v567 = vld [vmem:[#allocation11 + $0x58] sm:$0xff]
        %v568 = vld [vmem:[#allocation11 + $0x60] sm:$0xff]
        %v569 = vld [vmem:[#allocation11 + $0x68] sm:$0xff]
        %v570 = vld [vmem:[#allocation11 + $0x70] sm:$0xff]
        %v571 = vld [vmem:[#allocation11 + $0x78] sm:$0xff]
        %v572 = vld [vmem:[#allocation11 + $0x80] sm:$0xff]
        %v573 = vld [vmem:[#allocation11 + $0x88] sm:$0xff]
        %v574 = vld [vmem:[#allocation11 + $0x90] sm:$0xff]
        %v575 = vld [vmem:[#allocation11 + $0x98] sm:$0xff]
        %v576 = vld [vmem:[#allocation11 + $0xa0] sm:$0xff]
        %v577 = vld [vmem:[#allocation11 + $0xa8] sm:$0xff]
        %v578 = vld [vmem:[#allocation11 + $0xb0] sm:$0xff]
        %v579 = vld [vmem:[#allocation11 + $0xb8] sm:$0xff]
        %v580 = vld [vmem:[#allocation11 + $0xc0] sm:$0xff]
        %v581 = vld [vmem:[#allocation11 + $0xc8] sm:$0xff]
        %v582 = vld [vmem:[#allocation11 + $0xd0] sm:$0xff]
        %v583 = vld [vmem:[#allocation11 + $0xd8] sm:$0xff]
        %v584 = vld [vmem:[#allocation11 + $0xe0] sm:$0xff]
        %v585 = vld [vmem:[#allocation11 + $0xe8] sm:$0xff]
        %v586 = vld [vmem:[#allocation11 + $0xf0] sm:$0xff]
        %v587 = vld [vmem:[#allocation11 + $0xf8] sm:$0xff]
        %v588 = vld [vmem:[#allocation11 + $0x100] sm:$0xff]
        %v589 = vld [vmem:[#allocation11 + $0x108] sm:$0xff]
        %v590 = vld [vmem:[#allocation11 + $0x110] sm:$0xff]
        %v591 = vld [vmem:[#allocation11 + $0x118] sm:$0xff]
        %v592 = vld [vmem:[#allocation11 + $0x120] sm:$0xff]
        %v593 = vld [vmem:[#allocation11 + $0x128] sm:$0xff]
        %v594 = vld [vmem:[#allocation11 + $0x130] sm:$0xff]
        %v595 = vld [vmem:[#allocation11 + $0x138] sm:$0xff]
        %v596 = vld [vmem:[#allocation11 + $0x140] sm:$0xff]
        %v597 = vld [vmem:[#allocation11 + $0x148] sm:$0xff]
        %v598 = vld [vmem:[#allocation11 + $0x150] sm:$0xff]
        %v599 = vld [vmem:[#allocation11 + $0x158] sm:$0xff]
        %v600 = vld [vmem:[#allocation11 + $0x160] sm:$0xff]
        %v601 = vld [vmem:[#allocation11 + $0x168] sm:$0xff]
        %v602 = vld [vmem:[#allocation11 + $0x170] sm:$0xff]
        %v603 = vld [vmem:[#allocation11 + $0x178] sm:$0xff]
        %v604 = vld [vmem:[#allocation11 + $0x180] sm:$0xff]
        %v605 = vld [vmem:[#allocation11 + $0x188] sm:$0xff]
        %v606 = vld [vmem:[#allocation11 + $0x190] sm:$0xff]
        %v607 = vld [vmem:[#allocation11 + $0x198] sm:$0xff]
        %v608 = vld [vmem:[#allocation11 + $0x1a0] sm:$0xff]
        %v609 = vld [vmem:[#allocation11 + $0x1a8] sm:$0xff]
        %v610 = vld [vmem:[#allocation11 + $0x1b0] sm:$0xff]
        %v611 = vld [vmem:[#allocation11 + $0x1b8] sm:$0xff]
        %v612 = vld [vmem:[#allocation11 + $0x1c0] sm:$0xff]
        %v613 = vld [vmem:[#allocation11 + $0x1c8] sm:$0xff]
        %v614 = vld [vmem:[#allocation11 + $0x1d0] sm:$0xff]
        %v615 = vld [vmem:[#allocation11 + $0x1d8] sm:$0xff]
        %v616 = vld [vmem:[#allocation11 + $0x1e0] sm:$0xff]
        %v617 = vld [vmem:[#allocation11 + $0x1e8] sm:$0xff]
        %v618 = vld [vmem:[#allocation11 + $0x1f0] sm:$0xff]
        %v619 = vld [vmem:[#allocation11 + $0x1f8] sm:$0xff]
        %v620 = vld [vmem:[#allocation12] sm:$0xff]
        %v621 = vld [vmem:[#allocation12 + $0x8] sm:$0xff]
        %v622 = vld [vmem:[#allocation12 + $0x10] sm:$0xff]
        %v623 = vld [vmem:[#allocation12 + $0x18] sm:$0xff]
        %v624 = vld [vmem:[#allocation12 + $0x20] sm:$0xff]
        %v625 = vld [vmem:[#allocation12 + $0x28] sm:$0xff]
        %v626 = vld [vmem:[#allocation12 + $0x30] sm:$0xff]
        %v627 = vld [vmem:[#allocation12 + $0x38] sm:$0xff]
        %v628 = vld [vmem:[#allocation12 + $0x40] sm:$0xff]
        %v629 = vld [vmem:[#allocation12 + $0x48] sm:$0xff]
        %v630 = vld [vmem:[#allocation12 + $0x50] sm:$0xff]
        %v631 = vld [vmem:[#allocation12 + $0x58] sm:$0xff]
        %v632 = vld [vmem:[#allocation12 + $0x60] sm:$0xff]
        %v633 = vld [vmem:[#allocation12 + $0x68] sm:$0xff]
        %v634 = vld [vmem:[#allocation12 + $0x70] sm:$0xff]
        %v635 = vld [vmem:[#allocation12 + $0x78] sm:$0xff]
        %v636 = vld [vmem:[#allocation12 + $0x80] sm:$0xff]
        %v637 = vld [vmem:[#allocation12 + $0x88] sm:$0xff]
        %v638 = vld [vmem:[#allocation12 + $0x90] sm:$0xff]
        %v639 = vld [vmem:[#allocation12 + $0x98] sm:$0xff]
        %v640 = vld [vmem:[#allocation12 + $0xa0] sm:$0xff]
        %v641 = vld [vmem:[#allocation12 + $0xa8] sm:$0xff]
        %v642 = vld [vmem:[#allocation12 + $0xb0] sm:$0xff]
        %v643 = vld [vmem:[#allocation12 + $0xb8] sm:$0xff]
        %v644 = vld [vmem:[#allocation12 + $0xc0] sm:$0xff]
        %v645 = vld [vmem:[#allocation12 + $0xc8] sm:$0xff]
        %v646 = vld [vmem:[#allocation12 + $0xd0] sm:$0xff]
        %v647 = vld [vmem:[#allocation12 + $0xd8] sm:$0xff]
        %v648 = vld [vmem:[#allocation12 + $0xe0] sm:$0xff]
        %v649 = vld [vmem:[#allocation12 + $0xe8] sm:$0xff]
        %v650 = vld [vmem:[#allocation12 + $0xf0] sm:$0xff]
        %v651 = vld [vmem:[#allocation12 + $0xf8] sm:$0xff]
        %v652 = vld [vmem:[#allocation12 + $0x100] sm:$0xff]
        %v653 = vld [vmem:[#allocation12 + $0x108] sm:$0xff]
        %v654 = vld [vmem:[#allocation12 + $0x110] sm:$0xff]
        %v655 = vld [vmem:[#allocation12 + $0x118] sm:$0xff]
        %v656 = vld [vmem:[#allocation12 + $0x120] sm:$0xff]
        %v657 = vld [vmem:[#allocation12 + $0x128] sm:$0xff]
        %v658 = vld [vmem:[#allocation12 + $0x130] sm:$0xff]
        %v659 = vld [vmem:[#allocation12 + $0x138] sm:$0xff]
        %v660 = vld [vmem:[#allocation12 + $0x140] sm:$0xff]
        %v661 = vld [vmem:[#allocation12 + $0x148] sm:$0xff]
        %v662 = vld [vmem:[#allocation12 + $0x150] sm:$0xff]
        %v663 = vld [vmem:[#allocation12 + $0x158] sm:$0xff]
        %v664 = vld [vmem:[#allocation12 + $0x160] sm:$0xff]
        %v665 = vld [vmem:[#allocation12 + $0x168] sm:$0xff]
        %v666 = vld [vmem:[#allocation12 + $0x170] sm:$0xff]
        %v667 = vld [vmem:[#allocation12 + $0x178] sm:$0xff]
        %v668 = vld [vmem:[#allocation12 + $0x180] sm:$0xff]
        %v669 = vld [vmem:[#allocation12 + $0x188] sm:$0xff]
        %v670 = vld [vmem:[#allocation12 + $0x190] sm:$0xff]
        %v671 = vld [vmem:[#allocation12 + $0x198] sm:$0xff]
        %v672 = vld [vmem:[#allocation12 + $0x1a0] sm:$0xff]
        %v673 = vld [vmem:[#allocation12 + $0x1a8] sm:$0xff]
        %v674 = vld [vmem:[#allocation12 + $0x1b0] sm:$0xff]
        %v675 = vld [vmem:[#allocation12 + $0x1b8] sm:$0xff]
        %v676 = vld [vmem:[#allocation12 + $0x1c0] sm:$0xff]
        %v677 = vld [vmem:[#allocation12 + $0x1c8] sm:$0xff]
        %v678 = vld [vmem:[#allocation12 + $0x1d0] sm:$0xff]
        %v679 = vld [vmem:[#allocation12 + $0x1d8] sm:$0xff]
        %v680 = vld [vmem:[#allocation12 + $0x1e0] sm:$0xff]
        %v681 = vld [vmem:[#allocation12 + $0x1e8] sm:$0xff]
        %v682 = vld [vmem:[#allocation12 + $0x1f0] sm:$0xff]
        %v683 = vld [vmem:[#allocation12 + $0x1f8] sm:$0xff]
        %v684 = vld [vmem:[#allocation2] sm:$0xff]
        %v685 = vld [vmem:[#allocation3] sm:$0xff]
        %v686 = vld [vmem:[#allocation4] sm:$0xff]
        %v687 = vld [vmem:[#allocation5] sm:$0xff]
        %v688 = vld [vmem:[%s447] sm:$0xff]
        %v689 = vld [vmem:[%s447 + $0x8] sm:$0xff]
        %v690 = vld [vmem:[%s447 + $0x10] sm:$0xff]
        %v691 = vld [vmem:[%s447 + $0x18] sm:$0xff]
        %v692 = vld [vmem:[%s535] sm:$0xff]
        %693 = vmatpush.msra.mxu0 %v616
        %694 = vmatpush.msra.mxu0 %v612
        %695 = vmatpush.msra.mxu0 %v608
        %696 = vmatpush.msra.mxu0 %v604
        %697 = vmatpush.msra.mxu0 %v600
        %698 = vmatpush.msra.mxu0 %v596
        %699 = vmatpush.msra.mxu0 %v592
        %700 = vmatpush.msra.mxu0 %v588
        %701 = vmatpush.msra.mxu0 %v584
        %702 = vmatpush.msra.mxu0 %v580
        %703 = vmatpush.msra.mxu0 %v576
        %704 = vmatpush.msra.mxu0 %v572
        %705 = vmatpush.msra.mxu0 %v568
        %706 = vmatpush.msra.mxu0 %v564
        %707 = vmatpush.msra.mxu0 %v560
        %708 = vmatpush.msra.mxu0 %v556
        %709 = vmatmul.f32.gmra.mxu0 %v684
        %v710 = vpop.f32.mrf.mxu0
        %v711 = vadd.f32 0.0, %v710
        %712 = vdwg.mxu0
        %713 = vmatpush.msra.mxu0 %v617
        %714 = vmatpush.msra.mxu0 %v613
        %715 = vmatpush.msra.mxu0 %v609
        %716 = vmatpush.msra.mxu0 %v605
        %717 = vmatpush.msra.mxu0 %v601
        %718 = vmatpush.msra.mxu0 %v597
        %719 = vmatpush.msra.mxu0 %v593
        %720 = vmatpush.msra.mxu0 %v589
        %721 = vmatpush.msra.mxu0 %v585
        %722 = vmatpush.msra.mxu0 %v581
        %723 = vmatpush.msra.mxu0 %v577
        %724 = vmatpush.msra.mxu0 %v573
        %725 = vmatpush.msra.mxu0 %v569
        %726 = vmatpush.msra.mxu0 %v565
        %727 = vmatpush.msra.mxu0 %v561
        %728 = vmatpush.msra.mxu0 %v557
        %729 = vmatmul.f32.gmra.mxu0 %v684
        %v730 = vpop.f32.mrf.mxu0
        %v731 = vadd.f32 0.0, %v730
        %732 = vdwg.mxu0
        %733 = vmatpush.msra.mxu0 %v618
        %734 = vmatpush.msra.mxu0 %v614
        %735 = vmatpush.msra.mxu0 %v610
        %736 = vmatpush.msra.mxu0 %v606
        %737 = vmatpush.msra.mxu0 %v602
        %738 = vmatpush.msra.mxu0 %v598
        %739 = vmatpush.msra.mxu0 %v594
        %740 = vmatpush.msra.mxu0 %v590
        %741 = vmatpush.msra.mxu0 %v586
        %742 = vmatpush.msra.mxu0 %v582
        %743 = vmatpush.msra.mxu0 %v578
        %744 = vmatpush.msra.mxu0 %v574
        %745 = vmatpush.msra.mxu0 %v570
        %746 = vmatpush.msra.mxu0 %v566
        %747 = vmatpush.msra.mxu0 %v562
        %748 = vmatpush.msra.mxu0 %v558
        %749 = vmatmul.f32.gmra.mxu0 %v684
        %v750 = vpop.f32.mrf.mxu0
        %v751 = vadd.f32 0.0, %v750
        %752 = vdwg.mxu0
        %753 = vmatpush.msra.mxu0 %v619
        %754 = vmatpush.msra.mxu0 %v615
        %755 = vmatpush.msra.mxu0 %v611
        %756 = vmatpush.msra.mxu0 %v607
        %757 = vmatpush.msra.mxu0 %v603
        %758 = vmatpush.msra.mxu0 %v599
        %759 = vmatpush.msra.mxu0 %v595
        %760 = vmatpush.msra.mxu0 %v591
        %761 = vmatpush.msra.mxu0 %v587
        %762 = vmatpush.msra.mxu0 %v583
        %763 = vmatpush.msra.mxu0 %v579
        %764 = vmatpush.msra.mxu0 %v575
        %765 = vmatpush.msra.mxu0 %v571
        %766 = vmatpush.msra.mxu0 %v567
        %767 = vmatpush.msra.mxu0 %v563
        %768 = vmatpush.msra.mxu0 %v559
        %769 = vmatmul.f32.gmra.mxu0 %v684
        %v770 = vpop.f32.mrf.mxu0
        %v771 = vadd.f32 0.0, %v770
        %772 = vdwg.mxu0
        %v773 = vadd.f32 %v688, %v711
        %v774 = vadd.f32 %v689, %v731
        %v775 = vadd.f32 %v690, %v751
        %v776 = vadd.f32 %v691, %v771
        %v777 = vmul.f32 %v773, 0.5
        %v778 = vtanh.pop %v777
        %v779 = vmul.f32 %v778, 0.5
        %v780 = vadd.f32 %v779, 0.5
        %v781 = vmul.f32 %v774, 0.5
        %v782 = vtanh.pop %v781
        %v783 = vmul.f32 %v782, 0.5
        %v784 = vadd.f32 %v783, 0.5
        %v785 = vtanh.pop %v775
        %v786 = vmul.f32 %v776, 0.5
        %v787 = vtanh.pop %v786
        %v788 = vmul.f32 %v787, 0.5
        %v789 = vadd.f32 %v788, 0.5
        %v790 = vmul.f32 %v784, %v685
        %v791 = vmul.f32 %v780, %v785
        %v792 = vadd.f32 %v790, %v791
        %v793 = vtanh.pop %v792
        %v794 = vmul.f32 %v789, %v793
        %796 = vset.pattern.permute.xlu0 0
        %797 = vperm.xlu0 %796, %v692
        %v798 = vpop.permute.xlu0 %797
        %v800 = vmul.f32 %v794, %v798
        %v801 = vmul.f32 %v792, %v798
        %s802 = scalar_lea.vmem %s457, 96 [#allocation9]
        %v803 = vld [vmem:[%s802] sm:$0xff]
        %v804 = vld [vmem:[%s802 + $0x8] sm:$0xff]
        %v805 = vld [vmem:[%s802 + $0x10] sm:$0xff]
        %v806 = vld [vmem:[%s802 + $0x18] sm:$0xff]
        %s807 = scalar_lea.vmem %s542, 24
        %v808 = vld [vmem:[%s807] sm:$0xff]
        %809 = vmatpush.msra.mxu0 %v680
        %810 = vmatpush.msra.mxu0 %v676
        %811 = vmatpush.msra.mxu0 %v672
        %812 = vmatpush.msra.mxu0 %v668
        %813 = vmatpush.msra.mxu0 %v664
        %814 = vmatpush.msra.mxu0 %v660
        %815 = vmatpush.msra.mxu0 %v656
        %816 = vmatpush.msra.mxu0 %v652
        %817 = vmatpush.msra.mxu0 %v648
        %818 = vmatpush.msra.mxu0 %v644
        %819 = vmatpush.msra.mxu0 %v640
        %820 = vmatpush.msra.mxu0 %v636
        %821 = vmatpush.msra.mxu0 %v632
        %822 = vmatpush.msra.mxu0 %v628
        %823 = vmatpush.msra.mxu0 %v624
        %824 = vmatpush.msra.mxu0 %v620
        %825 = vmatmul.f32.gmra.mxu0 %v686
        %v826 = vpop.f32.mrf.mxu0
        %v827 = vadd.f32 0.0, %v826
        %828 = vdwg.mxu0
        %829 = vmatpush.msra.mxu0 %v681
        %830 = vmatpush.msra.mxu0 %v677
        %831 = vmatpush.msra.mxu0 %v673
        %832 = vmatpush.msra.mxu0 %v669
        %833 = vmatpush.msra.mxu0 %v665
        %834 = vmatpush.msra.mxu0 %v661
        %835 = vmatpush.msra.mxu0 %v657
        %836 = vmatpush.msra.mxu0 %v653
        %837 = vmatpush.msra.mxu0 %v649
        %838 = vmatpush.msra.mxu0 %v645
        %839 = vmatpush.msra.mxu0 %v641
        %840 = vmatpush.msra.mxu0 %v637
        %841 = vmatpush.msra.mxu0 %v633
        %842 = vmatpush.msra.mxu0 %v629
        %843 = vmatpush.msra.mxu0 %v625
        %844 = vmatpush.msra.mxu0 %v621
        %845 = vmatmul.f32.gmra.mxu0 %v686
        %v846 = vpop.f32.mrf.mxu0
        %v847 = vadd.f32 0.0, %v846
        %848 = vdwg.mxu0
        %849 = vmatpush.msra.mxu0 %v682
        %850 = vmatpush.msra.mxu0 %v678
        %851 = vmatpush.msra.mxu0 %v674
        %852 = vmatpush.msra.mxu0 %v670
        %853 = vmatpush.msra.mxu0 %v666
        %854 = vmatpush.msra.mxu0 %v662
        %855 = vmatpush.msra.mxu0 %v658
        %856 = vmatpush.msra.mxu0 %v654
        %857 = vmatpush.msra.mxu0 %v650
        %858 = vmatpush.msra.mxu0 %v646
        %859 = vmatpush.msra.mxu0 %v642
        %860 = vmatpush.msra.mxu0 %v638
        %861 = vmatpush.msra.mxu0 %v634
        %862 = vmatpush.msra.mxu0 %v630
        %863 = vmatpush.msra.mxu0 %v626
        %864 = vmatpush.msra.mxu0 %v622
        %865 = vmatmul.f32.gmra.mxu0 %v686
        %v866 = vpop.f32.mrf.mxu0
        %v867 = vadd.f32 0.0, %v866
        %868 = vdwg.mxu0
        %869 = vmatpush.msra.mxu0 %v683
        %870 = vmatpush.msra.mxu0 %v679
        %871 = vmatpush.msra.mxu0 %v675
        %872 = vmatpush.msra.mxu0 %v671
        %873 = vmatpush.msra.mxu0 %v667
        %874 = vmatpush.msra.mxu0 %v663
        %875 = vmatpush.msra.mxu0 %v659
        %876 = vmatpush.msra.mxu0 %v655
        %877 = vmatpush.msra.mxu0 %v651
        %878 = vmatpush.msra.mxu0 %v647
        %879 = vmatpush.msra.mxu0 %v643
        %880 = vmatpush.msra.mxu0 %v639
        %881 = vmatpush.msra.mxu0 %v635
        %882 = vmatpush.msra.mxu0 %v631
        %883 = vmatpush.msra.mxu0 %v627
        %884 = vmatpush.msra.mxu0 %v623
        %885 = vmatmul.f32.gmra.mxu0 %v686
        %v886 = vpop.f32.mrf.mxu0
        %v887 = vadd.f32 0.0, %v886
        %888 = vdwg.mxu0
        %v889 = vadd.f32 %v803, %v827
        %v890 = vadd.f32 %v804, %v847
        %v891 = vadd.f32 %v805, %v867
        %v892 = vadd.f32 %v806, %v887
        %v893 = vmul.f32 %v889, 0.5
        %v894 = vtanh.pop %v893
        %v895 = vmul.f32 %v894, 0.5
        %v896 = vadd.f32 %v895, 0.5
        %v897 = vmul.f32 %v890, 0.5
        %v898 = vtanh.pop %v897
        %v899 = vmul.f32 %v898, 0.5
        %v900 = vadd.f32 %v899, 0.5
        %v901 = vtanh.pop %v891
        %v902 = vmul.f32 %v892, 0.5
        %v903 = vtanh.pop %v902
        %v904 = vmul.f32 %v903, 0.5
        %v905 = vadd.f32 %v904, 0.5
        %v906 = vmul.f32 %v900, %v687
        %v907 = vmul.f32 %v896, %v901
        %v908 = vadd.f32 %v906, %v907
        %v909 = vtanh.pop %v908
        %v910 = vmul.f32 %v905, %v909
        %912 = vset.pattern.permute.xlu0 0
        %913 = vperm.xlu0 %912, %v808
        %v914 = vpop.permute.xlu0 %913
        %v916 = vmul.f32 %v910, %v914
        %v917 = vmul.f32 %v908, %v914
        %918 = vst [vmem:[%s512] sm:$0xff] %v800
        %s919 = scalar_lea.vmem %s519, 24 [#allocation15]
        %920 = vst [vmem:[%s919] sm:$0xff] %v916
        %s921 = scalar_lea.vmem %s447, 32 [#allocation6]
        %v922 = vld [vmem:[%s921] sm:$0xff]
        %v923 = vld [vmem:[%s921 + $0x8] sm:$0xff]
        %v924 = vld [vmem:[%s921 + $0x10] sm:$0xff]
        %v925 = vld [vmem:[%s921 + $0x18] sm:$0xff]
        %s926 = scalar_lea.vmem %s535, 8
        %v927 = vld [vmem:[%s926] sm:$0xff]
        %928 = vmatpush.msra.mxu0 %v616
        %929 = vmatpush.msra.mxu0 %v612
        %930 = vmatpush.msra.mxu0 %v608
        %931 = vmatpush.msra.mxu0 %v604
        %932 = vmatpush.msra.mxu0 %v600
        %933 = vmatpush.msra.mxu0 %v596
        %934 = vmatpush.msra.mxu0 %v592
        %935 = vmatpush.msra.mxu0 %v588
        %936 = vmatpush.msra.mxu0 %v584
        %937 = vmatpush.msra.mxu0 %v580
        %938 = vmatpush.msra.mxu0 %v576
        %939 = vmatpush.msra.mxu0 %v572
        %940 = vmatpush.msra.mxu0 %v568
        %941 = vmatpush.msra.mxu0 %v564
        %942 = vmatpush.msra.mxu0 %v560
        %943 = vmatpush.msra.mxu0 %v556
        %944 = vmatmul.f32.gmra.mxu0 %v800
        %v945 = vpop.f32.mrf.mxu0
        %v946 = vadd.f32 0.0, %v945
        %947 = vdwg.mxu0
        %948 = vmatpush.msra.mxu0 %v617
        %949 = vmatpush.msra.mxu0 %v613
        %950 = vmatpush.msra.mxu0 %v609
        %951 = vmatpush.msra.mxu0 %v605
        %952 = vmatpush.msra.mxu0 %v601
        %953 = vmatpush.msra.mxu0 %v597
        %954 = vmatpush.msra.mxu0 %v593
        %955 = vmatpush.msra.mxu0 %v589
        %956 = vmatpush.msra.mxu0 %v585
        %957 = vmatpush.msra.mxu0 %v581
        %958 = vmatpush.msra.mxu0 %v577
        %959 = vmatpush.msra.mxu0 %v573
        %960 = vmatpush.msra.mxu0 %v569
        %961 = vmatpush.msra.mxu0 %v565
        %962 = vmatpush.msra.mxu0 %v561
        %963 = vmatpush.msra.mxu0 %v557
        %964 = vmatmul.f32.gmra.mxu0 %v800
        %v965 = vpop.f32.mrf.mxu0
        %v966 = vadd.f32 0.0, %v965
        %967 = vdwg.mxu0
        %968 = vmatpush.msra.mxu0 %v618
        %969 = vmatpush.msra.mxu0 %v614
        %970 = vmatpush.msra.mxu0 %v610
        %971 = vmatpush.msra.mxu0 %v606
        %972 = vmatpush.msra.mxu0 %v602
        %973 = vmatpush.msra.mxu0 %v598
        %974 = vmatpush.msra.mxu0 %v594
        %975 = vmatpush.msra.mxu0 %v590
        %976 = vmatpush.msra.mxu0 %v586
        %977 = vmatpush.msra.mxu0 %v582
        %978 = vmatpush.msra.mxu0 %v578
        %979 = vmatpush.msra.mxu0 %v574
        %980 = vmatpush.msra.mxu0 %v570
        %981 = vmatpush.msra.mxu0 %v566
        %982 = vmatpush.msra.mxu0 %v562
        %983 = vmatpush.msra.mxu0 %v558
        %984 = vmatmul.f32.gmra.mxu0 %v800
        %v985 = vpop.f32.mrf.mxu0
        %v986 = vadd.f32 0.0, %v985
        %987 = vdwg.mxu0
        %988 = vmatpush.msra.mxu0 %v619
        %989 = vmatpush.msra.mxu0 %v615
        %990 = vmatpush.msra.mxu0 %v611
        %991 = vmatpush.msra.mxu0 %v607
        %992 = vmatpush.msra.mxu0 %v603
        %993 = vmatpush.msra.mxu0 %v599
        %994 = vmatpush.msra.mxu0 %v595
        %995 = vmatpush.msra.mxu0 %v591
        %996 = vmatpush.msra.mxu0 %v587
        %997 = vmatpush.msra.mxu0 %v583
        %998 = vmatpush.msra.mxu0 %v579
        %999 = vmatpush.msra.mxu0 %v575
        %1000 = vmatpush.msra.mxu0 %v571
        %1001 = vmatpush.msra.mxu0 %v567
        %1002 = vmatpush.msra.mxu0 %v563
        %1003 = vmatpush.msra.mxu0 %v559
        %1004 = vmatmul.f32.gmra.mxu0 %v800
        %v1005 = vpop.f32.mrf.mxu0
        %v1006 = vadd.f32 0.0, %v1005
        %1007 = vdwg.mxu0
        %v1008 = vadd.f32 %v922, %v946
        %v1009 = vadd.f32 %v923, %v966
        %v1010 = vadd.f32 %v924, %v986
        %v1011 = vadd.f32 %v925, %v1006
        %v1012 = vmul.f32 %v1008, 0.5
        %v1013 = vtanh.pop %v1012
        %v1014 = vmul.f32 %v1013, 0.5
        %v1015 = vadd.f32 %v1014, 0.5
        %v1016 = vmul.f32 %v1009, 0.5
        %v1017 = vtanh.pop %v1016
        %v1018 = vmul.f32 %v1017, 0.5
        %v1019 = vadd.f32 %v1018, 0.5
        %v1020 = vtanh.pop %v1010
        %v1021 = vmul.f32 %v1011, 0.5
        %v1022 = vtanh.pop %v1021
        %v1023 = vmul.f32 %v1022, 0.5
        %v1024 = vadd.f32 %v1023, 0.5
        %v1025 = vmul.f32 %v1019, %v801
        %v1026 = vmul.f32 %v1015, %v1020
        %v1027 = vadd.f32 %v1025, %v1026
        %v1028 = vtanh.pop %v1027
        %v1029 = vmul.f32 %v1024, %v1028
        %1031 = vset.pattern.permute.xlu0 0
        %1032 = vperm.xlu0 %1031, %v927
        %v1033 = vpop.permute.xlu0 %1032
        %v1035 = vmul.f32 %v1029, %v1033
        %v1036 = vmul.f32 %v1027, %v1033
        %s1037 = scalar_lea.vmem %s457, 64 [#allocation9]
        %v1038 = vld [vmem:[%s1037] sm:$0xff]
        %v1039 = vld [vmem:[%s1037 + $0x8] sm:$0xff]
        %v1040 = vld [vmem:[%s1037 + $0x10] sm:$0xff]
        %v1041 = vld [vmem:[%s1037 + $0x18] sm:$0xff]
        %s1042 = scalar_lea.vmem %s542, 16
        %v1043 = vld [vmem:[%s1042] sm:$0xff]
        %1044 = vmatpush.msra.mxu0 %v680
        %1045 = vmatpush.msra.mxu0 %v676
        %1046 = vmatpush.msra.mxu0 %v672
        %1047 = vmatpush.msra.mxu0 %v668
        %1048 = vmatpush.msra.mxu0 %v664
        %1049 = vmatpush.msra.mxu0 %v660
        %1050 = vmatpush.msra.mxu0 %v656
        %1051 = vmatpush.msra.mxu0 %v652
        %1052 = vmatpush.msra.mxu0 %v648
        %1053 = vmatpush.msra.mxu0 %v644
        %1054 = vmatpush.msra.mxu0 %v640
        %1055 = vmatpush.msra.mxu0 %v636
        %1056 = vmatpush.msra.mxu0 %v632
        %1057 = vmatpush.msra.mxu0 %v628
        %1058 = vmatpush.msra.mxu0 %v624
        %1059 = vmatpush.msra.mxu0 %v620
        %1060 = vmatmul.f32.gmra.mxu0 %v916
        %v1061 = vpop.f32.mrf.mxu0
        %v1062 = vadd.f32 0.0, %v1061
        %1063 = vdwg.mxu0
        %1064 = vmatpush.msra.mxu0 %v681
        %1065 = vmatpush.msra.mxu0 %v677
        %1066 = vmatpush.msra.mxu0 %v673
        %1067 = vmatpush.msra.mxu0 %v669
        %1068 = vmatpush.msra.mxu0 %v665
        %1069 = vmatpush.msra.mxu0 %v661
        %1070 = vmatpush.msra.mxu0 %v657
        %1071 = vmatpush.msra.mxu0 %v653
        %1072 = vmatpush.msra.mxu0 %v649
        %1073 = vmatpush.msra.mxu0 %v645
        %1074 = vmatpush.msra.mxu0 %v641
        %1075 = vmatpush.msra.mxu0 %v637
        %1076 = vmatpush.msra.mxu0 %v633
        %1077 = vmatpush.msra.mxu0 %v629
        %1078 = vmatpush.msra.mxu0 %v625
        %1079 = vmatpush.msra.mxu0 %v621
        %1080 = vmatmul.f32.gmra.mxu0 %v916
        %v1081 = vpop.f32.mrf.mxu0
        %v1082 = vadd.f32 0.0, %v1081
        %1083 = vdwg.mxu0
        %1084 = vmatpush.msra.mxu0 %v682
        %1085 = vmatpush.msra.mxu0 %v678
        %1086 = vmatpush.msra.mxu0 %v674
        %1087 = vmatpush.msra.mxu0 %v670
        %1088 = vmatpush.msra.mxu0 %v666
        %1089 = vmatpush.msra.mxu0 %v662
        %1090 = vmatpush.msra.mxu0 %v658
        %1091 = vmatpush.msra.mxu0 %v654
        %1092 = vmatpush.msra.mxu0 %v650
        %1093 = vmatpush.msra.mxu0 %v646
        %1094 = vmatpush.msra.mxu0 %v642
        %1095 = vmatpush.msra.mxu0 %v638
        %1096 = vmatpush.msra.mxu0 %v634
        %1097 = vmatpush.msra.mxu0 %v630
        %1098 = vmatpush.msra.mxu0 %v626
        %1099 = vmatpush.msra.mxu0 %v622
        %1100 = vmatmul.f32.gmra.mxu0 %v916
        %v1101 = vpop.f32.mrf.mxu0
        %v1102 = vadd.f32 0.0, %v1101
        %1103 = vdwg.mxu0
        %1104 = vmatpush.msra.mxu0 %v683
        %1105 = vmatpush.msra.mxu0 %v679
        %1106 = vmatpush.msra.mxu0 %v675
        %1107 = vmatpush.msra.mxu0 %v671
        %1108 = vmatpush.msra.mxu0 %v667
        %1109 = vmatpush.msra.mxu0 %v663
        %1110 = vmatpush.msra.mxu0 %v659
        %1111 = vmatpush.msra.mxu0 %v655
        %1112 = vmatpush.msra.mxu0 %v651
        %1113 = vmatpush.msra.mxu0 %v647
        %1114 = vmatpush.msra.mxu0 %v643
        %1115 = vmatpush.msra.mxu0 %v639
        %1116 = vmatpush.msra.mxu0 %v635
        %1117 = vmatpush.msra.mxu0 %v631
        %1118 = vmatpush.msra.mxu0 %v627
        %1119 = vmatpush.msra.mxu0 %v623
        %1120 = vmatmul.f32.gmra.mxu0 %v916
        %v1121 = vpop.f32.mrf.mxu0
        %v1122 = vadd.f32 0.0, %v1121
        %1123 = vdwg.mxu0
        %v1124 = vadd.f32 %v1038, %v1062
        %v1125 = vadd.f32 %v1039, %v1082
        %v1126 = vadd.f32 %v1040, %v1102
        %v1127 = vadd.f32 %v1041, %v1122
        %v1128 = vmul.f32 %v1124, 0.5
        %v1129 = vtanh.pop %v1128
        %v1130 = vmul.f32 %v1129, 0.5
        %v1131 = vadd.f32 %v1130, 0.5
        %v1132 = vmul.f32 %v1125, 0.5
        %v1133 = vtanh.pop %v1132
        %v1134 = vmul.f32 %v1133, 0.5
        %v1135 = vadd.f32 %v1134, 0.5
        %v1136 = vtanh.pop %v1126
        %v1137 = vmul.f32 %v1127, 0.5
        %v1138 = vtanh.pop %v1137
        %v1139 = vmul.f32 %v1138, 0.5
        %v1140 = vadd.f32 %v1139, 0.5
        %v1141 = vmul.f32 %v1135, %v917
        %v1142 = vmul.f32 %v1131, %v1136
        %v1143 = vadd.f32 %v1141, %v1142
        %v1144 = vtanh.pop %v1143
        %v1145 = vmul.f32 %v1140, %v1144
        %1147 = vset.pattern.permute.xlu0 0
        %1148 = vperm.xlu0 %1147, %v1043
        %v1149 = vpop.permute.xlu0 %1148
        %v1151 = vmul.f32 %v1145, %v1149
        %v1152 = vmul.f32 %v1143, %v1149
        %s1153 = scalar_lea.vmem %s512, 8 [#allocation14]
        %1154 = vst [vmem:[%s1153] sm:$0xff] %v1035
        %s1155 = scalar_lea.vmem %s519, 16 [#allocation15]
        %1156 = vst [vmem:[%s1155] sm:$0xff] %v1151
        %s1157 = scalar_lea.vmem %s447, 64 [#allocation6]
        %v1158 = vld [vmem:[%s1157] sm:$0xff]
        %v1159 = vld [vmem:[%s1157 + $0x8] sm:$0xff]
        %v1160 = vld [vmem:[%s1157 + $0x10] sm:$0xff]
        %v1161 = vld [vmem:[%s1157 + $0x18] sm:$0xff]
        %s1162 = scalar_lea.vmem %s535, 16
        %v1163 = vld [vmem:[%s1162] sm:$0xff]
        %1164 = vmatpush.msra.mxu0 %v616
        %1165 = vmatpush.msra.mxu0 %v612
        %1166 = vmatpush.msra.mxu0 %v608
        %1167 = vmatpush.msra.mxu0 %v604
        %1168 = vmatpush.msra.mxu0 %v600
        %1169 = vmatpush.msra.mxu0 %v596
        %1170 = vmatpush.msra.mxu0 %v592
        %1171 = vmatpush.msra.mxu0 %v588
        %1172 = vmatpush.msra.mxu0 %v584
        %1173 = vmatpush.msra.mxu0 %v580
        %1174 = vmatpush.msra.mxu0 %v576
        %1175 = vmatpush.msra.mxu0 %v572
        %1176 = vmatpush.msra.mxu0 %v568
        %1177 = vmatpush.msra.mxu0 %v564
        %1178 = vmatpush.msra.mxu0 %v560
        %1179 = vmatpush.msra.mxu0 %v556
        %1180 = vmatmul.f32.gmra.mxu0 %v1035
        %v1181 = vpop.f32.mrf.mxu0
        %v1182 = vadd.f32 0.0, %v1181
        %1183 = vdwg.mxu0
        %1184 = vmatpush.msra.mxu0 %v617
        %1185 = vmatpush.msra.mxu0 %v613
        %1186 = vmatpush.msra.mxu0 %v609
        %1187 = vmatpush.msra.mxu0 %v605
        %1188 = vmatpush.msra.mxu0 %v601
        %1189 = vmatpush.msra.mxu0 %v597
        %1190 = vmatpush.msra.mxu0 %v593
        %1191 = vmatpush.msra.mxu0 %v589
        %1192 = vmatpush.msra.mxu0 %v585
        %1193 = vmatpush.msra.mxu0 %v581
        %1194 = vmatpush.msra.mxu0 %v577
        %1195 = vmatpush.msra.mxu0 %v573
        %1196 = vmatpush.msra.mxu0 %v569
        %1197 = vmatpush.msra.mxu0 %v565
        %1198 = vmatpush.msra.mxu0 %v561
        %1199 = vmatpush.msra.mxu0 %v557
        %1200 = vmatmul.f32.gmra.mxu0 %v1035
        %v1201 = vpop.f32.mrf.mxu0
        %v1202 = vadd.f32 0.0, %v1201
        %1203 = vdwg.mxu0
        %1204 = vmatpush.msra.mxu0 %v618
        %1205 = vmatpush.msra.mxu0 %v614
        %1206 = vmatpush.msra.mxu0 %v610
        %1207 = vmatpush.msra.mxu0 %v606
        %1208 = vmatpush.msra.mxu0 %v602
        %1209 = vmatpush.msra.mxu0 %v598
        %1210 = vmatpush.msra.mxu0 %v594
        %1211 = vmatpush.msra.mxu0 %v590
        %1212 = vmatpush.msra.mxu0 %v586
        %1213 = vmatpush.msra.mxu0 %v582
        %1214 = vmatpush.msra.mxu0 %v578
        %1215 = vmatpush.msra.mxu0 %v574
        %1216 = vmatpush.msra.mxu0 %v570
        %1217 = vmatpush.msra.mxu0 %v566
        %1218 = vmatpush.msra.mxu0 %v562
        %1219 = vmatpush.msra.mxu0 %v558
        %1220 = vmatmul.f32.gmra.mxu0 %v1035
        %v1221 = vpop.f32.mrf.mxu0
        %v1222 = vadd.f32 0.0, %v1221
        %1223 = vdwg.mxu0
        %1224 = vmatpush.msra.mxu0 %v619
        %1225 = vmatpush.msra.mxu0 %v615
        %1226 = vmatpush.msra.mxu0 %v611
        %1227 = vmatpush.msra.mxu0 %v607
        %1228 = vmatpush.msra.mxu0 %v603
        %1229 = vmatpush.msra.mxu0 %v599
        %1230 = vmatpush.msra.mxu0 %v595
        %1231 = vmatpush.msra.mxu0 %v591
        %1232 = vmatpush.msra.mxu0 %v587
        %1233 = vmatpush.msra.mxu0 %v583
        %1234 = vmatpush.msra.mxu0 %v579
        %1235 = vmatpush.msra.mxu0 %v575
        %1236 = vmatpush.msra.mxu0 %v571
        %1237 = vmatpush.msra.mxu0 %v567
        %1238 = vmatpush.msra.mxu0 %v563
        %1239 = vmatpush.msra.mxu0 %v559
        %1240 = vmatmul.f32.gmra.mxu0 %v1035
        %v1241 = vpop.f32.mrf.mxu0
        %v1242 = vadd.f32 0.0, %v1241
        %1243 = vdwg.mxu0
        %v1244 = vadd.f32 %v1158, %v1182
        %v1245 = vadd.f32 %v1159, %v1202
        %v1246 = vadd.f32 %v1160, %v1222
        %v1247 = vadd.f32 %v1161, %v1242
        %v1248 = vmul.f32 %v1244, 0.5
        %v1249 = vtanh.pop %v1248
        %v1250 = vmul.f32 %v1249, 0.5
        %v1251 = vadd.f32 %v1250, 0.5
        %v1252 = vmul.f32 %v1245, 0.5
        %v1253 = vtanh.pop %v1252
        %v1254 = vmul.f32 %v1253, 0.5
        %v1255 = vadd.f32 %v1254, 0.5
        %v1256 = vtanh.pop %v1246
        %v1257 = vmul.f32 %v1247, 0.5
        %v1258 = vtanh.pop %v1257
        %v1259 = vmul.f32 %v1258, 0.5
        %v1260 = vadd.f32 %v1259, 0.5
        %v1261 = vmul.f32 %v1255, %v1036
        %v1262 = vmul.f32 %v1251, %v1256
        %v1263 = vadd.f32 %v1261, %v1262
        %v1264 = vtanh.pop %v1263
        %v1265 = vmul.f32 %v1260, %v1264
        %1267 = vset.pattern.permute.xlu0 0
        %1268 = vperm.xlu0 %1267, %v1163
        %v1269 = vpop.permute.xlu0 %1268
        %v1271 = vmul.f32 %v1265, %v1269
        %v1272 = vmul.f32 %v1263, %v1269
        %s1273 = scalar_lea.vmem %s457, 32 [#allocation9]
        %v1274 = vld [vmem:[%s1273] sm:$0xff]
        %v1275 = vld [vmem:[%s1273 + $0x8] sm:$0xff]
        %v1276 = vld [vmem:[%s1273 + $0x10] sm:$0xff]
        %v1277 = vld [vmem:[%s1273 + $0x18] sm:$0xff]
        %s1278 = scalar_lea.vmem %s542, 8
        %v1279 = vld [vmem:[%s1278] sm:$0xff]
        %1280 = vmatpush.msra.mxu0 %v680
        %1281 = vmatpush.msra.mxu0 %v676
        %1282 = vmatpush.msra.mxu0 %v672
        %1283 = vmatpush.msra.mxu0 %v668
        %1284 = vmatpush.msra.mxu0 %v664
        %1285 = vmatpush.msra.mxu0 %v660
        %1286 = vmatpush.msra.mxu0 %v656
        %1287 = vmatpush.msra.mxu0 %v652
        %1288 = vmatpush.msra.mxu0 %v648
        %1289 = vmatpush.msra.mxu0 %v644
        %1290 = vmatpush.msra.mxu0 %v640
        %1291 = vmatpush.msra.mxu0 %v636
        %1292 = vmatpush.msra.mxu0 %v632
        %1293 = vmatpush.msra.mxu0 %v628
        %1294 = vmatpush.msra.mxu0 %v624
        %1295 = vmatpush.msra.mxu0 %v620
        %1296 = vmatmul.f32.gmra.mxu0 %v1151
        %v1297 = vpop.f32.mrf.mxu0
        %v1298 = vadd.f32 0.0, %v1297
        %1299 = vdwg.mxu0
        %1300 = vmatpush.msra.mxu0 %v681
        %1301 = vmatpush.msra.mxu0 %v677
        %1302 = vmatpush.msra.mxu0 %v673
        %1303 = vmatpush.msra.mxu0 %v669
        %1304 = vmatpush.msra.mxu0 %v665
        %1305 = vmatpush.msra.mxu0 %v661
        %1306 = vmatpush.msra.mxu0 %v657
        %1307 = vmatpush.msra.mxu0 %v653
        %1308 = vmatpush.msra.mxu0 %v649
        %1309 = vmatpush.msra.mxu0 %v645
        %1310 = vmatpush.msra.mxu0 %v641
        %1311 = vmatpush.msra.mxu0 %v637
        %1312 = vmatpush.msra.mxu0 %v633
        %1313 = vmatpush.msra.mxu0 %v629
        %1314 = vmatpush.msra.mxu0 %v625
        %1315 = vmatpush.msra.mxu0 %v621
        %1316 = vmatmul.f32.gmra.mxu0 %v1151
        %v1317 = vpop.f32.mrf.mxu0
        %v1318 = vadd.f32 0.0, %v1317
        %1319 = vdwg.mxu0
        %1320 = vmatpush.msra.mxu0 %v682
        %1321 = vmatpush.msra.mxu0 %v678
        %1322 = vmatpush.msra.mxu0 %v674
        %1323 = vmatpush.msra.mxu0 %v670
        %1324 = vmatpush.msra.mxu0 %v666
        %1325 = vmatpush.msra.mxu0 %v662
        %1326 = vmatpush.msra.mxu0 %v658
        %1327 = vmatpush.msra.mxu0 %v654
        %1328 = vmatpush.msra.mxu0 %v650
        %1329 = vmatpush.msra.mxu0 %v646
        %1330 = vmatpush.msra.mxu0 %v642
        %1331 = vmatpush.msra.mxu0 %v638
        %1332 = vmatpush.msra.mxu0 %v634
        %1333 = vmatpush.msra.mxu0 %v630
        %1334 = vmatpush.msra.mxu0 %v626
        %1335 = vmatpush.msra.mxu0 %v622
        %1336 = vmatmul.f32.gmra.mxu0 %v1151
        %v1337 = vpop.f32.mrf.mxu0
        %v1338 = vadd.f32 0.0, %v1337
        %1339 = vdwg.mxu0
        %1340 = vmatpush.msra.mxu0 %v683
        %1341 = vmatpush.msra.mxu0 %v679
        %1342 = vmatpush.msra.mxu0 %v675
        %1343 = vmatpush.msra.mxu0 %v671
        %1344 = vmatpush.msra.mxu0 %v667
        %1345 = vmatpush.msra.mxu0 %v663
        %1346 = vmatpush.msra.mxu0 %v659
        %1347 = vmatpush.msra.mxu0 %v655
        %1348 = vmatpush.msra.mxu0 %v651
        %1349 = vmatpush.msra.mxu0 %v647
        %1350 = vmatpush.msra.mxu0 %v643
        %1351 = vmatpush.msra.mxu0 %v639
        %1352 = vmatpush.msra.mxu0 %v635
        %1353 = vmatpush.msra.mxu0 %v631
        %1354 = vmatpush.msra.mxu0 %v627
        %1355 = vmatpush.msra.mxu0 %v623
        %1356 = vmatmul.f32.gmra.mxu0 %v1151
        %v1357 = vpop.f32.mrf.mxu0
        %v1358 = vadd.f32 0.0, %v1357
        %1359 = vdwg.mxu0
        %v1360 = vadd.f32 %v1274, %v1298
        %v1361 = vadd.f32 %v1275, %v1318
        %v1362 = vadd.f32 %v1276, %v1338
        %v1363 = vadd.f32 %v1277, %v1358
        %v1364 = vmul.f32 %v1360, 0.5
        %v1365 = vtanh.pop %v1364
        %v1366 = vmul.f32 %v1365, 0.5
        %v1367 = vadd.f32 %v1366, 0.5
        %v1368 = vmul.f32 %v1361, 0.5
        %v1369 = vtanh.pop %v1368
        %v1370 = vmul.f32 %v1369, 0.5
        %v1371 = vadd.f32 %v1370, 0.5
        %v1372 = vtanh.pop %v1362
        %v1373 = vmul.f32 %v1363, 0.5
        %v1374 = vtanh.pop %v1373
        %v1375 = vmul.f32 %v1374, 0.5
        %v1376 = vadd.f32 %v1375, 0.5
        %v1377 = vmul.f32 %v1371, %v1152
        %v1378 = vmul.f32 %v1367, %v1372
        %v1379 = vadd.f32 %v1377, %v1378
        %v1380 = vtanh.pop %v1379
        %v1381 = vmul.f32 %v1376, %v1380
        %1383 = vset.pattern.permute.xlu0 0
        %1384 = vperm.xlu0 %1383, %v1279
        %v1385 = vpop.permute.xlu0 %1384
        %v1387 = vmul.f32 %v1381, %v1385
        %v1388 = vmul.f32 %v1379, %v1385
        %s1389 = scalar_lea.vmem %s512, 16 [#allocation14]
        %1390 = vst [vmem:[%s1389] sm:$0xff] %v1271
        %s1391 = scalar_lea.vmem %s519, 8 [#allocation15]
        %1392 = vst [vmem:[%s1391] sm:$0xff] %v1387
        %s1393 = scalar_lea.vmem %s447, 96 [#allocation6]
        %v1394 = vld [vmem:[%s1393] sm:$0xff]
        %v1395 = vld [vmem:[%s1393 + $0x8] sm:$0xff]
        %v1396 = vld [vmem:[%s1393 + $0x10] sm:$0xff]
        %v1397 = vld [vmem:[%s1393 + $0x18] sm:$0xff]
        %s1398 = scalar_lea.vmem %s535, 24
        %v1399 = vld [vmem:[%s1398] sm:$0xff]
        %1400 = vmatpush.msra.mxu0 %v616
        %1401 = vmatpush.msra.mxu0 %v612
        %1402 = vmatpush.msra.mxu0 %v608
        %1403 = vmatpush.msra.mxu0 %v604
        %1404 = vmatpush.msra.mxu0 %v600
        %1405 = vmatpush.msra.mxu0 %v596
        %1406 = vmatpush.msra.mxu0 %v592
        %1407 = vmatpush.msra.mxu0 %v588
        %1408 = vmatpush.msra.mxu0 %v584
        %1409 = vmatpush.msra.mxu0 %v580
        %1410 = vmatpush.msra.mxu0 %v576
        %1411 = vmatpush.msra.mxu0 %v572
        %1412 = vmatpush.msra.mxu0 %v568
        %1413 = vmatpush.msra.mxu0 %v564
        %1414 = vmatpush.msra.mxu0 %v560
        %1415 = vmatpush.msra.mxu0 %v556
        %1416 = vmatmul.f32.gmra.mxu0 %v1271
        %v1417 = vpop.f32.mrf.mxu0
        %v1418 = vadd.f32 0.0, %v1417
        %1419 = vdwg.mxu0
        %1420 = vmatpush.msra.mxu0 %v617
        %1421 = vmatpush.msra.mxu0 %v613
        %1422 = vmatpush.msra.mxu0 %v609
        %1423 = vmatpush.msra.mxu0 %v605
        %1424 = vmatpush.msra.mxu0 %v601
        %1425 = vmatpush.msra.mxu0 %v597
        %1426 = vmatpush.msra.mxu0 %v593
        %1427 = vmatpush.msra.mxu0 %v589
        %1428 = vmatpush.msra.mxu0 %v585
        %1429 = vmatpush.msra.mxu0 %v581
        %1430 = vmatpush.msra.mxu0 %v577
        %1431 = vmatpush.msra.mxu0 %v573
        %1432 = vmatpush.msra.mxu0 %v569
        %1433 = vmatpush.msra.mxu0 %v565
        %1434 = vmatpush.msra.mxu0 %v561
        %1435 = vmatpush.msra.mxu0 %v557
        %1436 = vmatmul.f32.gmra.mxu0 %v1271
        %v1437 = vpop.f32.mrf.mxu0
        %v1438 = vadd.f32 0.0, %v1437
        %1439 = vdwg.mxu0
        %1440 = vmatpush.msra.mxu0 %v618
        %1441 = vmatpush.msra.mxu0 %v614
        %1442 = vmatpush.msra.mxu0 %v610
        %1443 = vmatpush.msra.mxu0 %v606
        %1444 = vmatpush.msra.mxu0 %v602
        %1445 = vmatpush.msra.mxu0 %v598
        %1446 = vmatpush.msra.mxu0 %v594
        %1447 = vmatpush.msra.mxu0 %v590
        %1448 = vmatpush.msra.mxu0 %v586
        %1449 = vmatpush.msra.mxu0 %v582
        %1450 = vmatpush.msra.mxu0 %v578
        %1451 = vmatpush.msra.mxu0 %v574
        %1452 = vmatpush.msra.mxu0 %v570
        %1453 = vmatpush.msra.mxu0 %v566
        %1454 = vmatpush.msra.mxu0 %v562
        %1455 = vmatpush.msra.mxu0 %v558
        %1456 = vmatmul.f32.gmra.mxu0 %v1271
        %v1457 = vpop.f32.mrf.mxu0
        %v1458 = vadd.f32 0.0, %v1457
        %1459 = vdwg.mxu0
        %1460 = vmatpush.msra.mxu0 %v619
        %1461 = vmatpush.msra.mxu0 %v615
        %1462 = vmatpush.msra.mxu0 %v611
        %1463 = vmatpush.msra.mxu0 %v607
        %1464 = vmatpush.msra.mxu0 %v603
        %1465 = vmatpush.msra.mxu0 %v599
        %1466 = vmatpush.msra.mxu0 %v595
        %1467 = vmatpush.msra.mxu0 %v591
        %1468 = vmatpush.msra.mxu0 %v587
        %1469 = vmatpush.msra.mxu0 %v583
        %1470 = vmatpush.msra.mxu0 %v579
        %1471 = vmatpush.msra.mxu0 %v575
        %1472 = vmatpush.msra.mxu0 %v571
        %1473 = vmatpush.msra.mxu0 %v567
        %1474 = vmatpush.msra.mxu0 %v563
        %1475 = vmatpush.msra.mxu0 %v559
        %1476 = vmatmul.f32.gmra.mxu0 %v1271
        %v1477 = vpop.f32.mrf.mxu0
        %v1478 = vadd.f32 0.0, %v1477
        %1479 = vdwg.mxu0
        %v1480 = vadd.f32 %v1394, %v1418
        %v1481 = vadd.f32 %v1395, %v1438
        %v1482 = vadd.f32 %v1396, %v1458
        %v1483 = vadd.f32 %v1397, %v1478
        %v1484 = vmul.f32 %v1480, 0.5
        %v1485 = vtanh.pop %v1484
        %v1486 = vmul.f32 %v1485, 0.5
        %v1487 = vadd.f32 %v1486, 0.5
        %v1488 = vmul.f32 %v1481, 0.5
        %v1489 = vtanh.pop %v1488
        %v1490 = vmul.f32 %v1489, 0.5
        %v1491 = vadd.f32 %v1490, 0.5
        %v1492 = vtanh.pop %v1482
        %v1493 = vmul.f32 %v1483, 0.5
        %v1494 = vtanh.pop %v1493
        %v1495 = vmul.f32 %v1494, 0.5
        %v1496 = vadd.f32 %v1495, 0.5
        %v1497 = vmul.f32 %v1491, %v1272
        %v1498 = vmul.f32 %v1487, %v1492
        %v1499 = vadd.f32 %v1497, %v1498
        %v1500 = vtanh.pop %v1499
        %v1501 = vmul.f32 %v1496, %v1500
        %1503 = vset.pattern.permute.xlu0 0
        %1504 = vperm.xlu0 %1503, %v1399
        %v1505 = vpop.permute.xlu0 %1504
        %v1507 = vmul.f32 %v1501, %v1505
        %v1508 = vmul.f32 %v1499, %v1505
        %v1509 = vld [vmem:[%s457] sm:$0xff]
        %v1510 = vld [vmem:[%s457 + $0x8] sm:$0xff]
        %v1511 = vld [vmem:[%s457 + $0x10] sm:$0xff]
        %v1512 = vld [vmem:[%s457 + $0x18] sm:$0xff]
        %v1513 = vld [vmem:[%s542] sm:$0xff]
        %1514 = vmatpush.msra.mxu0 %v680
        %1515 = vmatpush.msra.mxu0 %v676
        %1516 = vmatpush.msra.mxu0 %v672
        %1517 = vmatpush.msra.mxu0 %v668
        %1518 = vmatpush.msra.mxu0 %v664
        %1519 = vmatpush.msra.mxu0 %v660
        %1520 = vmatpush.msra.mxu0 %v656
        %1521 = vmatpush.msra.mxu0 %v652
        %1522 = vmatpush.msra.mxu0 %v648
        %1523 = vmatpush.msra.mxu0 %v644
        %1524 = vmatpush.msra.mxu0 %v640
        %1525 = vmatpush.msra.mxu0 %v636
        %1526 = vmatpush.msra.mxu0 %v632
        %1527 = vmatpush.msra.mxu0 %v628
        %1528 = vmatpush.msra.mxu0 %v624
        %1529 = vmatpush.msra.mxu0 %v620
        %1530 = vmatmul.f32.gmra.mxu0 %v1387
        %v1531 = vpop.f32.mrf.mxu0
        %v1532 = vadd.f32 0.0, %v1531
        %1533 = vdwg.mxu0
        %1534 = vmatpush.msra.mxu0 %v681
        %1535 = vmatpush.msra.mxu0 %v677
        %1536 = vmatpush.msra.mxu0 %v673
        %1537 = vmatpush.msra.mxu0 %v669
        %1538 = vmatpush.msra.mxu0 %v665
        %1539 = vmatpush.msra.mxu0 %v661
        %1540 = vmatpush.msra.mxu0 %v657
        %1541 = vmatpush.msra.mxu0 %v653
        %1542 = vmatpush.msra.mxu0 %v649
        %1543 = vmatpush.msra.mxu0 %v645
        %1544 = vmatpush.msra.mxu0 %v641
        %1545 = vmatpush.msra.mxu0 %v637
        %1546 = vmatpush.msra.mxu0 %v633
        %1547 = vmatpush.msra.mxu0 %v629
        %1548 = vmatpush.msra.mxu0 %v625
        %1549 = vmatpush.msra.mxu0 %v621
        %1550 = vmatmul.f32.gmra.mxu0 %v1387
        %v1551 = vpop.f32.mrf.mxu0
        %v1552 = vadd.f32 0.0, %v1551
        %1553 = vdwg.mxu0
        %1554 = vmatpush.msra.mxu0 %v682
        %1555 = vmatpush.msra.mxu0 %v678
        %1556 = vmatpush.msra.mxu0 %v674
        %1557 = vmatpush.msra.mxu0 %v670
        %1558 = vmatpush.msra.mxu0 %v666
        %1559 = vmatpush.msra.mxu0 %v662
        %1560 = vmatpush.msra.mxu0 %v658
        %1561 = vmatpush.msra.mxu0 %v654
        %1562 = vmatpush.msra.mxu0 %v650
        %1563 = vmatpush.msra.mxu0 %v646
        %1564 = vmatpush.msra.mxu0 %v642
        %1565 = vmatpush.msra.mxu0 %v638
        %1566 = vmatpush.msra.mxu0 %v634
        %1567 = vmatpush.msra.mxu0 %v630
        %1568 = vmatpush.msra.mxu0 %v626
        %1569 = vmatpush.msra.mxu0 %v622
        %1570 = vmatmul.f32.gmra.mxu0 %v1387
        %v1571 = vpop.f32.mrf.mxu0
        %v1572 = vadd.f32 0.0, %v1571
        %1573 = vdwg.mxu0
        %1574 = vmatpush.msra.mxu0 %v683
        %1575 = vmatpush.msra.mxu0 %v679
        %1576 = vmatpush.msra.mxu0 %v675
        %1577 = vmatpush.msra.mxu0 %v671
        %1578 = vmatpush.msra.mxu0 %v667
        %1579 = vmatpush.msra.mxu0 %v663
        %1580 = vmatpush.msra.mxu0 %v659
        %1581 = vmatpush.msra.mxu0 %v655
        %1582 = vmatpush.msra.mxu0 %v651
        %1583 = vmatpush.msra.mxu0 %v647
        %1584 = vmatpush.msra.mxu0 %v643
        %1585 = vmatpush.msra.mxu0 %v639
        %1586 = vmatpush.msra.mxu0 %v635
        %1587 = vmatpush.msra.mxu0 %v631
        %1588 = vmatpush.msra.mxu0 %v627
        %1589 = vmatpush.msra.mxu0 %v623
        %1590 = vmatmul.f32.gmra.mxu0 %v1387
        %v1591 = vpop.f32.mrf.mxu0
        %v1592 = vadd.f32 0.0, %v1591
        %1593 = vdwg.mxu0
        %v1594 = vadd.f32 %v1509, %v1532
        %v1595 = vadd.f32 %v1510, %v1552
        %v1596 = vadd.f32 %v1511, %v1572
        %v1597 = vadd.f32 %v1512, %v1592
        %v1598 = vmul.f32 %v1594, 0.5
        %v1599 = vtanh.pop %v1598
        %v1600 = vmul.f32 %v1599, 0.5
        %v1601 = vadd.f32 %v1600, 0.5
        %v1602 = vmul.f32 %v1595, 0.5
        %v1603 = vtanh.pop %v1602
        %v1604 = vmul.f32 %v1603, 0.5
        %v1605 = vadd.f32 %v1604, 0.5
        %v1606 = vtanh.pop %v1596
        %v1607 = vmul.f32 %v1597, 0.5
        %v1608 = vtanh.pop %v1607
        %v1609 = vmul.f32 %v1608, 0.5
        %v1610 = vadd.f32 %v1609, 0.5
        %v1611 = vmul.f32 %v1605, %v1388
        %v1612 = vmul.f32 %v1601, %v1606
        %v1613 = vadd.f32 %v1611, %v1612
        %v1614 = vtanh.pop %v1613
        %v1615 = vmul.f32 %v1610, %v1614
        %1617 = vset.pattern.permute.xlu0 0
        %1618 = vperm.xlu0 %1617, %v1513
        %v1619 = vpop.permute.xlu0 %1618
        %v1621 = vmul.f32 %v1615, %v1619
        %v1622 = vmul.f32 %v1613, %v1619
        %s1623 = scalar_lea.vmem %s512, 24 [#allocation14]
        %1624 = vst [vmem:[%s1623] sm:$0xff] %v1507
        %1625 = vst [vmem:[%s519] sm:$0xff] %v1621
        %1626 = vst [vmem:[#allocation2] sm:$0xff] %v1507
        %1627 = vst [vmem:[#allocation3] sm:$0xff] %v1508
        %1628 = vst [vmem:[#allocation4] sm:$0xff] %v1621
        %1629 = vst [vmem:[#allocation5] sm:$0xff] %v1622
        %p1630 = scmp.eq.s32.totalorder %s38, 1
        // Predicated region
        $region65: #{tpu_custom_call.1} parent=43 // pred_check
          %p1631 = pneg %p1630
        $region66: #{tpu_custom_call.1} parent=43 // pred_check_branch
          %1633 = sbr.rel (%p1631) target = $region68
        $region67: #{tpu_custom_call.1} parent=43 // pred_region
          %1634 = vst [vmem:[#allocation17] sm:$0xff] %v1507
          %1635 = vst [vmem:[#allocation18] sm:$0xff] %v1508
          %1636 = vst [vmem:[#allocation20] sm:$0xff] %v1621
          %1637 = vst [vmem:[#allocation21] sm:$0xff] %v1622
        $region68: #{tpu_custom_call.1} parent=43 // pred_fallthru
          _
        %s1638 = sand.u32 %s196, 1
        %s1639 = scalar_lea.sflag [#allocation8], %s1638
        %s1640 = sand.u32 %s196, 1
        %s1641 = smul.addr %s1640, 32
        %s1642 = scalar_lea.vmem [#allocation14], %s1641
        %s1643 = sand.u32 %s38, 1
        %s1644 = scalar_lea.sflag [#allocation16], %s1643
        %s1645 = sand.u32 %s224, 1
        %s1646 = smul.addr %s1645, 32
        %s1647 = scalar_lea.vmem [#allocation15], %s1646
        // Predicated region
        $region69: #{tpu_custom_call.1} parent=43 // pred_check
          %p1648 = pneg %p206
        $region70: #{tpu_custom_call.1} parent=43 // pred_check_branch
          %1650 = sbr.rel (%p1648) target = $region72
        $region71: #{tpu_custom_call.1} parent=43 // pred_region
          %s1651 = smul.u32 4, %s38
          %1653 = vsyncadd %s1639, 0
          %s1654 = smul.addr %s1651, 8
          %s1655 = scalar_lea.hbm %s6, %s1654
          %s1656 = sshll.u32 %s1642, 4
          %s1657 = int_to_ptr.vmem [resolvable:$true] %s1656
          %s1658 = sshll.u32 %s1655, 4
          %s1659 = int_to_ptr.hbm [resolvable:$true] %s1658
          %1664 = dma.vmem_to_hbm [thread:$0]  %s1657, 512, %s1659, %s1639, 128, 128, 8
        $region72: #{tpu_custom_call.1} parent=43 // pred_fallthru
          _
        // Predicated region
        $region73: #{tpu_custom_call.1} parent=43 // pred_check
          %p1665 = pneg %p234
        $region74: #{tpu_custom_call.1} parent=43 // pred_check_branch
          %1667 = sbr.rel (%p1665) target = $region76
        $region75: #{tpu_custom_call.1} parent=43 // pred_region
          %s1668 = ssub.s32 1, %s38
          %s1669 = smul.u32 4, %s1668
          %1671 = vsyncadd %s1644, 0
          %s1672 = smul.addr %s1669, 8
          %s1673 = scalar_lea.hbm %s7, %s1672
          %s1674 = sshll.u32 %s1647, 4
          %s1675 = int_to_ptr.vmem [resolvable:$true] %s1674
          %s1676 = sshll.u32 %s1673, 4
          %s1677 = int_to_ptr.hbm [resolvable:$true] %s1676
          %1682 = dma.vmem_to_hbm [thread:$0]  %s1675, 512, %s1677, %s1644, 128, 128, 8
        $region76: #{tpu_custom_call.1} parent=43 // pred_fallthru
          _
        // Predicated region
        $region77: #{tpu_custom_call.1} parent=43 // pred_check
          %p1683 = pneg %p255
        $region78: #{tpu_custom_call.1} parent=43 // pred_check_branch
          %1685 = sbr.rel (%p1683) target = $region80
        $region79: #{tpu_custom_call.1} parent=43 // pred_region
          %1687 = vsyncadd [#allocation16], 0
          %s1689 = sshll.u32 [#allocation17], 4
          %s1690 = int_to_ptr.vmem [resolvable:$true] %s1689
          %s1691 = sshll.u32 %s8, 4
          %s1692 = int_to_ptr.hbm [resolvable:$true] %s1691
          %1694 = dma.vmem_to_hbm [thread:$0]  %s1690, 128, %s1692, [#allocation16]
        $region80: #{tpu_custom_call.1} parent=43 // pred_fallthru
          _
        // Predicated region
        $region81: #{tpu_custom_call.1} parent=43 // pred_check
          %p1695 = pneg %p276
        $region82: #{tpu_custom_call.1} parent=43 // pred_check_branch
          %1697 = sbr.rel (%p1695) target = $region84
        $region83: #{tpu_custom_call.1} parent=43 // pred_region
          %1699 = vsyncadd [#allocation19], 0
          %s1701 = sshll.u32 [#allocation18], 4
          %s1702 = int_to_ptr.vmem [resolvable:$true] %s1701
          %s1703 = sshll.u32 %s9, 4
          %s1704 = int_to_ptr.hbm [resolvable:$true] %s1703
          %1706 = dma.vmem_to_hbm [thread:$0]  %s1702, 128, %s1704, [#allocation19]
        $region84: #{tpu_custom_call.1} parent=43 // pred_fallthru
          _
        // Predicated region
        $region85: #{tpu_custom_call.1} parent=43 // pred_check
          %p1707 = pneg %p297
        $region86: #{tpu_custom_call.1} parent=43 // pred_check_branch
          %1709 = sbr.rel (%p1707) target = $region88
        $region87: #{tpu_custom_call.1} parent=43 // pred_region
          %1711 = vsyncadd [#allocation19], 0
          %s1713 = sshll.u32 [#allocation20], 4
          %s1714 = int_to_ptr.vmem [resolvable:$true] %s1713
          %s1715 = sshll.u32 %s10, 4
          %s1716 = int_to_ptr.hbm [resolvable:$true] %s1715
          %1718 = dma.vmem_to_hbm [thread:$0]  %s1714, 128, %s1716, [#allocation19]
        $region88: #{tpu_custom_call.1} parent=43 // pred_fallthru
          _
        // Predicated region
        $region89: #{tpu_custom_call.1} parent=43 // pred_check
          %p1719 = pneg %p318
        $region90: #{tpu_custom_call.1} parent=43 // pred_check_branch
          %1721 = sbr.rel (%p1719) target = $region92
        $region91: #{tpu_custom_call.1} parent=43 // pred_region
          %1723 = vsyncadd [#allocation22], 0
          %s1725 = sshll.u32 [#allocation21], 4
          %s1726 = int_to_ptr.vmem [resolvable:$true] %s1725
          %s1727 = sshll.u32 %s11, 4
          %s1728 = int_to_ptr.hbm [resolvable:$true] %s1727
          %1730 = dma.vmem_to_hbm [thread:$0]  %s1726, 128, %s1728, [#allocation22]
        $region92: #{tpu_custom_call.1} parent=43 // pred_fallthru
          _
        // Predicated region
        $region93: #{tpu_custom_call.1} parent=43 // pred_check
          %p1731 = pneg %p255
        $region94: #{tpu_custom_call.1} parent=43 // pred_check_branch
          %1733 = sbr.rel (%p1731) target = $region96
        $region95: #{tpu_custom_call.1} parent=43 // pred_region
          %1735 = dma.done [#allocation16], 128
        $region96: #{tpu_custom_call.1} parent=43 // pred_fallthru
          _
        // Predicated region
        $region97: #{tpu_custom_call.1} parent=43 // pred_check
          %p1736 = pneg %p276
        $region98: #{tpu_custom_call.1} parent=43 // pred_check_branch
          %1738 = sbr.rel (%p1736) target = $region100
        $region99: #{tpu_custom_call.1} parent=43 // pred_region
          %1740 = dma.done [#allocation19], 128
        $region100: #{tpu_custom_call.1} parent=43 // pred_fallthru
          _
        // Predicated region
        $region101: #{tpu_custom_call.1} parent=43 // pred_check
          %p1741 = pneg %p297
        $region102: #{tpu_custom_call.1} parent=43 // pred_check_branch
          %1743 = sbr.rel (%p1741) target = $region104
        $region103: #{tpu_custom_call.1} parent=43 // pred_region
          %1745 = dma.done [#allocation19], 128
        $region104: #{tpu_custom_call.1} parent=43 // pred_fallthru
          _
        // Predicated region
        $region105: #{tpu_custom_call.1} parent=43 // pred_check
          %p1746 = pneg %p318
        $region106: #{tpu_custom_call.1} parent=43 // pred_check_branch
          %1748 = sbr.rel (%p1746) target = $region108
        $region107: #{tpu_custom_call.1} parent=43 // pred_region
          %1750 = dma.done [#allocation22], 128
        $region108: #{tpu_custom_call.1} parent=43 // pred_fallthru
          _
      $region44: #{tpu_custom_call.1} parent=5 // pred_fallthru
        _
      %p1751 = scmp.le.s32.totalorder 2, %s33
      // Predicated region
      $region109: #{tpu_custom_call.1} parent=5 // pred_check
        %p1752 = pneg %p1751
      $region110: #{tpu_custom_call.1} parent=5 // pred_check_branch
        %1754 = sbr.rel (%p1752) target = $region112
      $region111: #{tpu_custom_call.1} parent=5 // pred_region
        %s1755 = ssub.s32 %s33, 2
        // Predicated region
        $region113: #{tpu_custom_call.1} parent=111 // pred_check
          %p1756 = pneg %p212
        $region114: #{tpu_custom_call.1} parent=111 // pred_check_branch
          %1758 = sbr.rel (%p1756) target = $region116
        $region115: #{tpu_custom_call.1} parent=111 // pred_region
          %s1759 = sand.u32 %s197, 1
          %s1760 = scalar_lea.sflag [#allocation8], %s1759
          %s1761 = sand.u32 %s197, 1
          %s1762 = smul.addr %s1761, 32
          %s1763 = scalar_lea.vmem [#allocation14], %s1762
          %1765 = dma.done %s1760, 512
        $region116: #{tpu_custom_call.1} parent=111 // pred_fallthru
          _
        // Predicated region
        $region117: #{tpu_custom_call.1} parent=111 // pred_check
          %p1766 = pneg %p240
        $region118: #{tpu_custom_call.1} parent=111 // pred_check_branch
          %1768 = sbr.rel (%p1766) target = $region120
        $region119: #{tpu_custom_call.1} parent=111 // pred_region
          %s1769 = sand.u32 %s39, 1
          %s1770 = scalar_lea.sflag [#allocation16], %s1769
          %s1771 = sand.u32 %s225, 1
          %s1772 = smul.addr %s1771, 32
          %s1773 = scalar_lea.vmem [#allocation15], %s1772
          %1775 = dma.done %s1770, 512
        $region120: #{tpu_custom_call.1} parent=111 // pred_fallthru
          _
      $region112: #{tpu_custom_call.1} parent=5 // pred_fallthru
        _
    $region6: #{tpu_custom_call.1} parent=1 // loop_footer
      %s37 = sadd.s32 1, %s33
    $region7: #{tpu_custom_call.1} parent=1 // loop_footer_branch
      %32 = sbr.rel target = $region3
    $region8: #{tpu_custom_call.1} parent=1 // loop_exit
      _
    %1776 = vsyncpa [#allocation7], 1
    %s1777 = scalar_lea.sflag [#allocation7], 1
    %1778 = vsyncpa %s1777, 1
    %1779 = vsyncpa [#allocation10], 1
    %s1780 = scalar_lea.sflag [#allocation10], 1
    %1781 = vsyncpa %s1780, 1
    %1782 = vsyncpa [#allocation13], 1
    %1783 = vsyncpa [#allocation8], 1
    %s1784 = scalar_lea.sflag [#allocation8], 1
    %1785 = vsyncpa %s1784, 1
    %1786 = vsyncpa [#allocation16], 1
    %s1787 = scalar_lea.sflag [#allocation16], 1
    %1788 = vsyncpa %s1787, 1
    %1789 = vsyncpa [#allocation19], 1
    %1790 = vsyncpa [#allocation22], 1

</llo_original>
